<compile_context>
chip_gen: v7x
topology: tpu7x:2x2x1
jax: 0.10.0
libtpu: 0.0.40
codegen_flags: <defaults>
</compile_context>

<pallas_src>
import functools

import jax
import jax.numpy as jnp
from jax import lax
from jax.experimental import pallas as pl
from jax.experimental.pallas import tpu as pltpu

SUBLANE = 8   # f32 sublane tile
LANE = 128    # lane width


def _round_up(v, m):
    return ((v + m - 1) // m) * m


# ----------------------------------------------------------------------------
# Fused Pallas kernel (all LSTM layers + FC)
# ----------------------------------------------------------------------------
def _make_fused_kernel(num_layers: int, unroll):
    n_w = 3 * num_layers

    def kernel(x_ref, *refs):
        # refs = (wih_0, whh_0, b_0, ..., w_fc, b_fc, out_ref, gates_scr, hseq_scr)
        layer_refs = [refs[3 * l: 3 * l + 3] for l in range(num_layers)]
        w_fc_ref = refs[n_w]
        b_fc_ref = refs[n_w + 1]
        out_ref = refs[n_w + 2]
        gates_scr = refs[n_w + 3]   # (T, BB, 4H) f32, time-major pre-gates
        hseq_scr = refs[n_w + 4]    # (T, BB, H)  f32, inter-layer hidden seq

        T, BB, _ = x_ref.shape
        H = hseq_scr.shape[-1]
        G = 4 * H

        # Lane masks (hoisted once): "g" (cell-candidate) columns use tanh,
        # the i|f|o columns use sigmoid(x) = 0.5*tanh(0.5*x) + 0.5, so the
        # whole (BB,4H) tile needs ONE tanh pass per step.
        col = lax.broadcasted_iota(jnp.int32, (BB, G), 1)
        is_g = (col >= 2 * H) & (col < 3 * H)
        act_scale = jnp.where(is_g, 1.0, 0.5).astype(jnp.float32)   # in & out scale
        act_bias = jnp.where(is_g, 0.0, 0.5).astype(jnp.float32)

        h = jnp.zeros((BB, H), jnp.float32)
        c = jnp.zeros((BB, H), jnp.float32)

        for layer in range(num_layers):
            wih_ref, whh_ref, b_ref = layer_refs[layer]
            wih = wih_ref[...]
            whh = whh_ref[...]
            bias = b_ref[...]
            mm_dtype = wih.dtype

            # --- Hoisted input projection: one big matmul, off the serial path.
            inp = x_ref[...] if layer == 0 else hseq_scr[...]
            Tn, Bn, Din = inp.shape
            pre = jnp.dot(inp.reshape(Tn * Bn, Din).astype(mm_dtype), wih,
                          preferred_element_type=jnp.float32) + bias
            gates_scr[...] = pre.reshape(Tn, Bn, G)

            h = jnp.zeros((BB, H), jnp.float32)
            c = jnp.zeros((BB, H), jnp.float32)
            write_seq = layer < num_layers - 1  # last layer only needs h_{T-1}

            # TODO(synk): stage W_hh in MXU weight registers across the T steps
            # (pltpu.matmul_push_rhs / matmul_acc_lhs / matmul_pop); needs
            # MXU-aligned tiles, so the generic jnp.dot path is kept here.
            def step(t, carry, _whh=whh, _dt=mm_dtype, _write=write_seq):
                h, c = carry
                gates = (jnp.dot(h.astype(_dt), _whh,
                                 preferred_element_type=jnp.float32)
                         + gates_scr[t])
                # Single full-tile tanh + masked scale/bias -> i|f|o sigmoids
                # and g tanh in one EUP pass.
                th = jnp.tanh(gates * act_scale)
                act = th * act_scale + act_bias
                i_g = act[:, 0 * H:1 * H]
                f_g = act[:, 1 * H:2 * H]
                g_g = act[:, 2 * H:3 * H]
                o_g = act[:, 3 * H:4 * H]
                c_new = f_g * c + i_g * g_g
                h_new = o_g * jnp.tanh(c_new)
                if _write:
                    hseq_scr[t] = h_new
                return (h_new, c_new)

            # Unroll fully only for short T; cap otherwise to avoid vreg spills.
            h, c = lax.fori_loop(0, T, step, (h, c), unroll=unroll)

        # Final Linear on h_{T-1}; dropout(eval) == identity.  O is padded to a
        # full lane tile so this is an unmasked store.
        out_ref[...] = (jnp.dot(h, w_fc_ref[...],
                                preferred_element_type=jnp.float32)
                        + b_fc_ref[...]).astype(out_ref.dtype)

    return kernel


def _whole_spec(shape):
    zeros = (0,) * len(shape)
    return pl.BlockSpec(shape, lambda b, _z=zeros: _z)


# ----------------------------------------------------------------------------
# Wrapper
# ----------------------------------------------------------------------------
@functools.partial(jax.jit, static_argnames=("matmul_dtype",))
def lstm_model_forward(x, lstm_params, fc_params, matmul_dtype=jnp.float32):
    """x: (B, T, input_size) float32 (batch_first).  Returns (B, output_size)."""
    B, T, I = x.shape
    num_layers = len(lstm_params)
    H = lstm_params[0][1].shape[0]
    w_fc_t, b_fc = fc_params
    O = w_fc_t.shape[1]

    # Batch block: fill the MXU (up to 128 rows) while staying a multiple of
    # the f32 sublane tile.  Small batches are a single block.
    BB = min(_round_up(B, SUBLANE), 128)
    # TODO(synk): on v7x (2 TCs/chip) prefer BB ~= round_up(B_pad/2, 8) when the
    # batch is large enough so the "parallel" grid axis feeds both cores.
    B_pad = _round_up(B, BB)
    nb = B_pad // BB

    O_pad = _round_up(max(O, LANE), LANE)   # lane-dense output stores

    # Tiny XLA prep (fused by XLA): pad batch, go time-major, pad FC to O_pad.
    x_p = jnp.pad(x, ((0, B_pad - B), (0, 0), (0, 0)))
    x_tm = jnp.transpose(x_p, (1, 0, 2)).astype(jnp.float32)   # (T, B_pad, I)
    w_fc_p = jnp.pad(w_fc_t.astype(jnp.float32), ((0, 0), (0, O_pad - O)))
    b_fc_p = jnp.pad(b_fc.astype(jnp.float32), ((0, 0), (0, O_pad - O)))

    flat_inputs = [x_tm]
    in_specs = [pl.BlockSpec((T, BB, I), lambda b: (0, b, 0))]

    flops = 0
    trans = 0
    bytes_accessed = x_tm.size * 4
    vmem_bytes = 2 * T * BB * I * 4          # x block (double-buffered)
    for (wih_t, whh_t, bias) in lstm_params:
        # bf16 operands are fine on every TPU generation (the MXU takes bf16
        # even on v5e); gate math / h / c always stay float32.
        wih_c = wih_t.astype(matmul_dtype)
        whh_c = whh_t.astype(matmul_dtype)
        flat_inputs += [wih_c, whh_c, bias]
        in_specs += [_whole_spec(wih_c.shape), _whole_spec(whh_c.shape),
                     _whole_spec(bias.shape)]
        in_sz = wih_t.shape[0]
        flops += 2 * T * B_pad * (in_sz + H) * 4 * H
        trans += T * B_pad * 5 * H           # 4H gate tanh + H cell tanh / step
        w_bytes = ((wih_c.size + whh_c.size) * wih_c.dtype.itemsize
                   + bias.size * 4)
        bytes_accessed += w_bytes
        vmem_bytes += 2 * w_bytes            # default double-buffering
    flat_inputs += [w_fc_p, b_fc_p]
    in_specs += [_whole_spec(w_fc_p.shape), _whole_spec(b_fc_p.shape)]
    flops += 2 * B_pad * H * O_pad
    bytes_accessed += (w_fc_p.size + b_fc_p.size + B_pad * O_pad) * 4
    vmem_bytes += 2 * (w_fc_p.size + b_fc_p.size) * 4
    vmem_bytes += 2 * BB * O_pad * 4                       # output block
    vmem_bytes += T * BB * 4 * H * 4 + T * BB * H * 4      # VMEM scratches
    # Explicit budget (with slack); capped at 64 MiB so it also fits v7x VMEM.
    vmem_limit = int(min(max(vmem_bytes * 3 // 2 + (4 << 20), 32 << 20),
                         64 << 20))

    unroll = True if T <= 16 else 8

    out = pl.pallas_call(
        _make_fused_kernel(num_layers, unroll),
        out_shape=jax.ShapeDtypeStruct((B_pad, O_pad), jnp.float32),
        grid=(nb,),
        in_specs=in_specs,
        out_specs=pl.BlockSpec((BB, O_pad), lambda b: (b, 0)),
        scratch_shapes=[
            pltpu.VMEM((T, BB, 4 * H), jnp.float32),   # pre-gates (time-major)
            pltpu.VMEM((T, BB, H), jnp.float32),       # inter-layer hidden seq
        ],
        compiler_params=pltpu.CompilerParams(
            dimension_semantics=("parallel",),
            vmem_limit_bytes=vmem_limit),
        cost_estimate=pl.CostEstimate(
            flops=int(flops), transcendentals=int(trans),
            bytes_accessed=int(bytes_accessed)),
    )(*flat_inputs)
    return out[:B, :O]


# ----------------------------------------------------------------------------
# Pure-JAX reference for validation
# ----------------------------------------------------------------------------
def lstm_model_ref(x, lstm_params, fc_params):
    B, T, _ = x.shape
    seq = x
    for (wih_t, whh_t, bias) in lstm_params:
        H = whh_t.shape[0]
        h = jnp.zeros((B, H), jnp.float32)
        c = jnp.zeros((B, H), jnp.float32)
        outs = []
        for t in range(T):
            gates = seq[:, t, :] @ wih_t + h @ whh_t + bias
            i_g = jax.nn.sigmoid(gates[:, 0 * H:1 * H])
            f_g = jax.nn.sigmoid(gates[:, 1 * H:2 * H])
            g_g = jnp.tanh(gates[:, 2 * H:3 * H])
            o_g = jax.nn.sigmoid(gates[:, 3 * H:4 * H])
            c = f_g * c + i_g * g_g
            h = o_g * jnp.tanh(c)
            outs.append(h)
        seq = jnp.stack(outs, axis=1)
    w_fc_t, b_fc = fc_params
    return seq[:, -1, :] @ w_fc_t + b_fc


# ----------------------------------------------------------------------------
# Deterministic parameter init (PyTorch-style U(-1/sqrt(H), 1/sqrt(H)))
# ----------------------------------------------------------------------------
def init_params(key, input_size, hidden_size, num_layers, output_size):
    bound = 1.0 / jnp.sqrt(hidden_size)
    lstm_params = []
    for layer in range(num_layers):
        in_sz = input_size if layer == 0 else hidden_size
        key, k1, k2, k3, k4 = jax.random.split(key, 5)
        wih = jax.random.uniform(k1, (4 * hidden_size, in_sz), jnp.float32,
                                 -bound, bound)
        whh = jax.random.uniform(k2, (4 * hidden_size, hidden_size),
                                 jnp.float32, -bound, bound)
        b_ih = jax.random.uniform(k3, (4 * hidden_size,), jnp.float32,
                                  -bound, bound)
        b_hh = jax.random.uniform(k4, (4 * hidden_size,), jnp.float32,
                                  -bound, bound)
        lstm_params.append((wih.T, whh.T, (b_ih + b_hh).reshape(1, -1)))
    key, k1, k2 = jax.random.split(key, 3)
    fc_bound = 1.0 / jnp.sqrt(hidden_size)
    w_fc = jax.random.uniform(k1, (output_size, hidden_size), jnp.float32,
                              -fc_bound, fc_bound)
    b_fc = jax.random.uniform(k2, (output_size,), jnp.float32,
                              -fc_bound, fc_bound)
    fc_params = (w_fc.T, b_fc.reshape(1, -1))
    return lstm_params, fc_params


if __name__ == "__main__":
    B, T = 2, 8
    input_size, hidden_size, num_layers, output_size = 16, 32, 2, 4

    key = jax.random.PRNGKey(0)
    key, kx, kp = jax.random.split(key, 3)
    x = jax.random.normal(kx, (B, T, input_size), jnp.float32)
    lstm_params, fc_params = init_params(
        kp, input_size, hidden_size, num_layers, output_size
    )

    out = lstm_model_forward(x, lstm_params, fc_params)
    out = jax.block_until_ready(out)

    ref = lstm_model_ref(x, lstm_params, fc_params)
    assert out.shape == (B, output_size)
    assert jnp.allclose(out, ref, atol=1e-4, rtol=1e-4), (out, ref)

    print("KERNEL_OK")
</pallas_src>

<mosaic_0001>
module attributes {stable_mosaic.version = 11 : i64} {
  func.func @kernel(%arg0: i32, %arg1: memref<8x8x16xf32, #tpu.memory_space<vmem>>, %arg2: memref<16x128xf32, #tpu.memory_space<vmem>>, %arg3: memref<32x128xf32, #tpu.memory_space<vmem>>, %arg4: memref<1x128xf32, #tpu.memory_space<vmem>>, %arg5: memref<32x128xf32, #tpu.memory_space<vmem>>, %arg6: memref<32x128xf32, #tpu.memory_space<vmem>>, %arg7: memref<1x128xf32, #tpu.memory_space<vmem>>, %arg8: memref<32x128xf32, #tpu.memory_space<vmem>>, %arg9: memref<1x128xf32, #tpu.memory_space<vmem>>, %arg10: memref<8x128xf32, #tpu.memory_space<vmem>>, %arg11: memref<8x8x128xf32, #tpu.memory_space<vmem>>, %arg12: memref<8x8x32xf32, #tpu.memory_space<vmem>>) attributes {dimension_semantics = [#tpu.dimension_semantics<parallel>], iteration_bounds = array<i64: 1>, scalar_prefetch = 0 : i64, scratch_operands = 2 : i64, tpu.core_type = #tpu.core_type<tc>, window_params = [{transform_indices = @transform_0, window_bounds = array<i64: 8, 8, 16>}, {pipeline_mode = #tpu.pipeline_mode<synchronous>, transform_indices = @transform_1, window_bounds = array<i64: 16, 128>}, {pipeline_mode = #tpu.pipeline_mode<synchronous>, transform_indices = @transform_2, window_bounds = array<i64: 32, 128>}, {pipeline_mode = #tpu.pipeline_mode<synchronous>, transform_indices = @transform_3, window_bounds = array<i64: 1, 128>}, {pipeline_mode = #tpu.pipeline_mode<synchronous>, transform_indices = @transform_4, window_bounds = array<i64: 32, 128>}, {pipeline_mode = #tpu.pipeline_mode<synchronous>, transform_indices = @transform_5, window_bounds = array<i64: 32, 128>}, {pipeline_mode = #tpu.pipeline_mode<synchronous>, transform_indices = @transform_6, window_bounds = array<i64: 1, 128>}, {pipeline_mode = #tpu.pipeline_mode<synchronous>, transform_indices = @transform_7, window_bounds = array<i64: 32, 128>}, {pipeline_mode = #tpu.pipeline_mode<synchronous>, transform_indices = @transform_8, window_bounds = array<i64: 1, 128>}, {transform_indices = @transform_9, window_bounds = array<i64: 8, 128>}]} {
    %0 = tpu.iota {dimensions = array<i32: 1>} : vector<8x128xi32>
    %c64_i32 = arith.constant 64 : i32
    %1 = vector.broadcast %c64_i32 : i32 to vector<8x128xi32>
    %2 = arith.cmpi sge, %0, %1 : vector<8x128xi32>
    %c96_i32 = arith.constant 96 : i32
    %3 = vector.broadcast %c96_i32 : i32 to vector<8x128xi32>
    %4 = arith.cmpi slt, %0, %3 : vector<8x128xi32>
    %5 = arith.andi %2, %4 : vector<8x128xi1>
    %cst = arith.constant 1.000000e+00 : f32
    %cst_0 = arith.constant 5.000000e-01 : f32
    %6 = vector.broadcast %cst : f32 to vector<8x128xf32>
    %7 = vector.broadcast %cst_0 : f32 to vector<8x128xf32>
    %8 = arith.select %5, %6, %7 : vector<8x128xi1>, vector<8x128xf32>
    %cst_1 = arith.constant 0.000000e+00 : f32
    %cst_2 = arith.constant 5.000000e-01 : f32
    %9 = vector.broadcast %cst_1 : f32 to vector<8x128xf32>
    %10 = vector.broadcast %cst_2 : f32 to vector<8x128xf32>
    %11 = arith.select %5, %9, %10 : vector<8x128xi1>, vector<8x128xf32>
    %c0 = arith.constant 0 : index
    %c0_3 = arith.constant 0 : index
    %12 = vector.load %arg2[%c0, %c0_3] : memref<16x128xf32, #tpu.memory_space<vmem>>, vector<16x128xf32>
    %c0_4 = arith.constant 0 : index
    %c0_5 = arith.constant 0 : index
    %13 = vector.load %arg3[%c0_4, %c0_5] : memref<32x128xf32, #tpu.memory_space<vmem>>, vector<32x128xf32>
    %c0_6 = arith.constant 0 : index
    %c0_7 = arith.constant 0 : index
    %14 = vector.load %arg4[%c0_6, %c0_7] : memref<1x128xf32, #tpu.memory_space<vmem>>, vector<1x128xf32>
    %c0_8 = arith.constant 0 : index
    %c0_9 = arith.constant 0 : index
    %c0_10 = arith.constant 0 : index
    %15 = vector.load %arg1[%c0_8, %c0_9, %c0_10] : memref<8x8x16xf32, #tpu.memory_space<vmem>>, vector<8x8x16xf32>
    %16 = vector.shape_cast %15 : vector<8x8x16xf32> to vector<64x16xf32>
    %cst_11 = arith.constant dense<0.000000e+00> : vector<64x128xf32>
    %17 = tpu.matmul %16, %12, %cst_11 {dimension_numbers = #tpu.dot_dimension_numbers<[1], [0], [0], [1], [0, 0, 1, 1], [], []>} : vector<64x16xf32>, vector<16x128xf32>, vector<64x128xf32> -> vector<64x128xf32>
    %18 = vector.broadcast %14 : vector<1x128xf32> to vector<64x128xf32>
    %19 = arith.addf %17, %18 : vector<64x128xf32>
    %20 = vector.shape_cast %19 : vector<64x128xf32> to vector<8x8x128xf32>
    %c0_12 = arith.constant 0 : index
    %c0_13 = arith.constant 0 : index
    %c0_14 = arith.constant 0 : index
    %21 = vector.load %arg11[%c0_12, %c0_13, %c0_14] : memref<8x8x128xf32, #tpu.memory_space<vmem>>, vector<8x8x128xf32>
    tpu.vector_store %arg11[%c0_12, %c0_13, %c0_14], %20 {strides = array<i32>} : memref<8x8x128xf32, #tpu.memory_space<vmem>>, vector<8x8x128xf32>,
    %cst_15 = arith.constant 0.000000e+00 : f32
    %22 = vector.broadcast %cst_15 : f32 to vector<8x32xf32>
    %cst_16 = arith.constant 0.000000e+00 : f32
    %23 = vector.broadcast %cst_16 : f32 to vector<8x32xf32>
    %c0_i32 = arith.constant 0 : i32
    %cst_17 = arith.constant dense<0.000000e+00> : vector<8x128xf32>
    %24 = tpu.matmul %22, %13, %cst_17 {dimension_numbers = #tpu.dot_dimension_numbers<[1], [0], [0], [1], [0, 0, 1, 1], [], []>} : vector<8x32xf32>, vector<32x128xf32>, vector<8x128xf32> -> vector<8x128xf32>
    %25 = arith.index_cast %c0_i32 : i32 to index
    %c0_18 = arith.constant 0 : index
    %c0_19 = arith.constant 0 : index
    %26 = vector.load %arg11[%25, %c0_18, %c0_19] : memref<8x8x128xf32, #tpu.memory_space<vmem>>, vector<1x8x128xf32>
    %27 = vector.shape_cast %26 : vector<1x8x128xf32> to vector<8x128xf32>
    %28 = arith.addf %24, %27 : vector<8x128xf32>
    %29 = arith.mulf %28, %8 : vector<8x128xf32>
    %30 = math.tanh %29 : vector<8x128xf32>
    %31 = arith.mulf %30, %8 : vector<8x128xf32>
    %32 = arith.addf %31, %11 : vector<8x128xf32>
    %33 = vector.extract_strided_slice %32 {offsets = [0, 0], sizes = [8, 32], strides = [1, 1]} : vector<8x128xf32> to vector<8x32xf32>
    %34 = vector.extract_strided_slice %32 {offsets = [0, 32], sizes = [8, 32], strides = [1, 1]} : vector<8x128xf32> to vector<8x32xf32>
    %35 = vector.extract_strided_slice %32 {offsets = [0, 64], sizes = [8, 32], strides = [1, 1]} : vector<8x128xf32> to vector<8x32xf32>
    %36 = vector.extract_strided_slice %32 {offsets = [0, 96], sizes = [8, 32], strides = [1, 1]} : vector<8x128xf32> to vector<8x32xf32>
    %37 = arith.mulf %34, %23 : vector<8x32xf32>
    %38 = arith.mulf %33, %35 : vector<8x32xf32>
    %39 = arith.addf %37, %38 : vector<8x32xf32>
    %40 = math.tanh %39 : vector<8x32xf32>
    %41 = arith.mulf %36, %40 : vector<8x32xf32>
    %42 = arith.index_cast %c0_i32 : i32 to index
    %c0_20 = arith.constant 0 : index
    %c0_21 = arith.constant 0 : index
    %43 = vector.load %arg12[%42, %c0_20, %c0_21] : memref<8x8x32xf32, #tpu.memory_space<vmem>>, vector<1x8x32xf32>
    %44 = vector.shape_cast %43 : vector<1x8x32xf32> to vector<8x32xf32>
    %45 = vector.shape_cast %41 : vector<8x32xf32> to vector<1x8x32xf32>
    tpu.vector_store %arg12[%42, %c0_20, %c0_21], %45 {strides = array<i32>} : memref<8x8x32xf32, #tpu.memory_space<vmem>>, vector<1x8x32xf32>,
    %c1_i32 = arith.constant 1 : i32
    %cst_22 = arith.constant dense<0.000000e+00> : vector<8x128xf32>
    %46 = tpu.matmul %41, %13, %cst_22 {dimension_numbers = #tpu.dot_dimension_numbers<[1], [0], [0], [1], [0, 0, 1, 1], [], []>} : vector<8x32xf32>, vector<32x128xf32>, vector<8x128xf32> -> vector<8x128xf32>
    %47 = arith.index_cast %c1_i32 : i32 to index
    %c0_23 = arith.constant 0 : index
    %c0_24 = arith.constant 0 : index
    %48 = vector.load %arg11[%47, %c0_23, %c0_24] : memref<8x8x128xf32, #tpu.memory_space<vmem>>, vector<1x8x128xf32>
    %49 = vector.shape_cast %48 : vector<1x8x128xf32> to vector<8x128xf32>
    %50 = arith.addf %46, %49 : vector<8x128xf32>
    %51 = arith.mulf %50, %8 : vector<8x128xf32>
    %52 = math.tanh %51 : vector<8x128xf32>
    %53 = arith.mulf %52, %8 : vector<8x128xf32>
    %54 = arith.addf %53, %11 : vector<8x128xf32>
    %55 = vector.extract_strided_slice %54 {offsets = [0, 0], sizes = [8, 32], strides = [1, 1]} : vector<8x128xf32> to vector<8x32xf32>
    %56 = vector.extract_strided_slice %54 {offsets = [0, 32], sizes = [8, 32], strides = [1, 1]} : vector<8x128xf32> to vector<8x32xf32>
    %57 = vector.extract_strided_slice %54 {offsets = [0, 64], sizes = [8, 32], strides = [1, 1]} : vector<8x128xf32> to vector<8x32xf32>
    %58 = vector.extract_strided_slice %54 {offsets = [0, 96], sizes = [8, 32], strides = [1, 1]} : vector<8x128xf32> to vector<8x32xf32>
    %59 = arith.mulf %56, %39 : vector<8x32xf32>
    %60 = arith.mulf %55, %57 : vector<8x32xf32>
    %61 = arith.addf %59, %60 : vector<8x32xf32>
    %62 = math.tanh %61 : vector<8x32xf32>
    %63 = arith.mulf %58, %62 : vector<8x32xf32>
    %64 = arith.index_cast %c1_i32 : i32 to index
    %c0_25 = arith.constant 0 : index
    %c0_26 = arith.constant 0 : index
    %65 = vector.load %arg12[%64, %c0_25, %c0_26] : memref<8x8x32xf32, #tpu.memory_space<vmem>>, vector<1x8x32xf32>
    %66 = vector.shape_cast %65 : vector<1x8x32xf32> to vector<8x32xf32>
    %67 = vector.shape_cast %63 : vector<8x32xf32> to vector<1x8x32xf32>
    tpu.vector_store %arg12[%64, %c0_25, %c0_26], %67 {strides = array<i32>} : memref<8x8x32xf32, #tpu.memory_space<vmem>>, vector<1x8x32xf32>,
    %c2_i32 = arith.constant 2 : i32
    %cst_27 = arith.constant dense<0.000000e+00> : vector<8x128xf32>
    %68 = tpu.matmul %63, %13, %cst_27 {dimension_numbers = #tpu.dot_dimension_numbers<[1], [0], [0], [1], [0, 0, 1, 1], [], []>} : vector<8x32xf32>, vector<32x128xf32>, vector<8x128xf32> -> vector<8x128xf32>
    %69 = arith.index_cast %c2_i32 : i32 to index
    %c0_28 = arith.constant 0 : index
    %c0_29 = arith.constant 0 : index
    %70 = vector.load %arg11[%69, %c0_28, %c0_29] : memref<8x8x128xf32, #tpu.memory_space<vmem>>, vector<1x8x128xf32>
    %71 = vector.shape_cast %70 : vector<1x8x128xf32> to vector<8x128xf32>
    %72 = arith.addf %68, %71 : vector<8x128xf32>
    %73 = arith.mulf %72, %8 : vector<8x128xf32>
    %74 = math.tanh %73 : vector<8x128xf32>
    %75 = arith.mulf %74, %8 : vector<8x128xf32>
    %76 = arith.addf %75, %11 : vector<8x128xf32>
    %77 = vector.extract_strided_slice %76 {offsets = [0, 0], sizes = [8, 32], strides = [1, 1]} : vector<8x128xf32> to vector<8x32xf32>
    %78 = vector.extract_strided_slice %76 {offsets = [0, 32], sizes = [8, 32], strides = [1, 1]} : vector<8x128xf32> to vector<8x32xf32>
    %79 = vector.extract_strided_slice %76 {offsets = [0, 64], sizes = [8, 32], strides = [1, 1]} : vector<8x128xf32> to vector<8x32xf32>
    %80 = vector.extract_strided_slice %76 {offsets = [0, 96], sizes = [8, 32], strides = [1, 1]} : vector<8x128xf32> to vector<8x32xf32>
    %81 = arith.mulf %78, %61 : vector<8x32xf32>
    %82 = arith.mulf %77, %79 : vector<8x32xf32>
    %83 = arith.addf %81, %82 : vector<8x32xf32>
    %84 = math.tanh %83 : vector<8x32xf32>
    %85 = arith.mulf %80, %84 : vector<8x32xf32>
    %86 = arith.index_cast %c2_i32 : i32 to index
    %c0_30 = arith.constant 0 : index
    %c0_31 = arith.constant 0 : index
    %87 = vector.load %arg12[%86, %c0_30, %c0_31] : memref<8x8x32xf32, #tpu.memory_space<vmem>>, vector<1x8x32xf32>
    %88 = vector.shape_cast %87 : vector<1x8x32xf32> to vector<8x32xf32>
    %89 = vector.shape_cast %85 : vector<8x32xf32> to vector<1x8x32xf32>
    tpu.vector_store %arg12[%86, %c0_30, %c0_31], %89 {strides = array<i32>} : memref<8x8x32xf32, #tpu.memory_space<vmem>>, vector<1x8x32xf32>,
    %c3_i32 = arith.constant 3 : i32
    %cst_32 = arith.constant dense<0.000000e+00> : vector<8x128xf32>
    %90 = tpu.matmul %85, %13, %cst_32 {dimension_numbers = #tpu.dot_dimension_numbers<[1], [0], [0], [1], [0, 0, 1, 1], [], []>} : vector<8x32xf32>, vector<32x128xf32>, vector<8x128xf32> -> vector<8x128xf32>
    %91 = arith.index_cast %c3_i32 : i32 to index
    %c0_33 = arith.constant 0 : index
    %c0_34 = arith.constant 0 : index
    %92 = vector.load %arg11[%91, %c0_33, %c0_34] : memref<8x8x128xf32, #tpu.memory_space<vmem>>, vector<1x8x128xf32>
    %93 = vector.shape_cast %92 : vector<1x8x128xf32> to vector<8x128xf32>
    %94 = arith.addf %90, %93 : vector<8x128xf32>
    %95 = arith.mulf %94, %8 : vector<8x128xf32>
    %96 = math.tanh %95 : vector<8x128xf32>
    %97 = arith.mulf %96, %8 : vector<8x128xf32>
    %98 = arith.addf %97, %11 : vector<8x128xf32>
    %99 = vector.extract_strided_slice %98 {offsets = [0, 0], sizes = [8, 32], strides = [1, 1]} : vector<8x128xf32> to vector<8x32xf32>
    %100 = vector.extract_strided_slice %98 {offsets = [0, 32], sizes = [8, 32], strides = [1, 1]} : vector<8x128xf32> to vector<8x32xf32>
    %101 = vector.extract_strided_slice %98 {offsets = [0, 64], sizes = [8, 32], strides = [1, 1]} : vector<8x128xf32> to vector<8x32xf32>
    %102 = vector.extract_strided_slice %98 {offsets = [0, 96], sizes = [8, 32], strides = [1, 1]} : vector<8x128xf32> to vector<8x32xf32>
    %103 = arith.mulf %100, %83 : vector<8x32xf32>
    %104 = arith.mulf %99, %101 : vector<8x32xf32>
    %105 = arith.addf %103, %104 : vector<8x32xf32>
    %106 = math.tanh %105 : vector<8x32xf32>
    %107 = arith.mulf %102, %106 : vector<8x32xf32>
    %108 = arith.index_cast %c3_i32 : i32 to index
    %c0_35 = arith.constant 0 : index
    %c0_36 = arith.constant 0 : index
    %109 = vector.load %arg12[%108, %c0_35, %c0_36] : memref<8x8x32xf32, #tpu.memory_space<vmem>>, vector<1x8x32xf32>
    %110 = vector.shape_cast %109 : vector<1x8x32xf32> to vector<8x32xf32>
    %111 = vector.shape_cast %107 : vector<8x32xf32> to vector<1x8x32xf32>
    tpu.vector_store %arg12[%108, %c0_35, %c0_36], %111 {strides = array<i32>} : memref<8x8x32xf32, #tpu.memory_space<vmem>>, vector<1x8x32xf32>,
    %c4_i32 = arith.constant 4 : i32
    %cst_37 = arith.constant dense<0.000000e+00> : vector<8x128xf32>
    %112 = tpu.matmul %107, %13, %cst_37 {dimension_numbers = #tpu.dot_dimension_numbers<[1], [0], [0], [1], [0, 0, 1, 1], [], []>} : vector<8x32xf32>, vector<32x128xf32>, vector<8x128xf32> -> vector<8x128xf32>
    %113 = arith.index_cast %c4_i32 : i32 to index
    %c0_38 = arith.constant 0 : index
    %c0_39 = arith.constant 0 : index
    %114 = vector.load %arg11[%113, %c0_38, %c0_39] : memref<8x8x128xf32, #tpu.memory_space<vmem>>, vector<1x8x128xf32>
    %115 = vector.shape_cast %114 : vector<1x8x128xf32> to vector<8x128xf32>
    %116 = arith.addf %112, %115 : vector<8x128xf32>
    %117 = arith.mulf %116, %8 : vector<8x128xf32>
    %118 = math.tanh %117 : vector<8x128xf32>
    %119 = arith.mulf %118, %8 : vector<8x128xf32>
    %120 = arith.addf %119, %11 : vector<8x128xf32>
    %121 = vector.extract_strided_slice %120 {offsets = [0, 0], sizes = [8, 32], strides = [1, 1]} : vector<8x128xf32> to vector<8x32xf32>
    %122 = vector.extract_strided_slice %120 {offsets = [0, 32], sizes = [8, 32], strides = [1, 1]} : vector<8x128xf32> to vector<8x32xf32>
    %123 = vector.extract_strided_slice %120 {offsets = [0, 64], sizes = [8, 32], strides = [1, 1]} : vector<8x128xf32> to vector<8x32xf32>
    %124 = vector.extract_strided_slice %120 {offsets = [0, 96], sizes = [8, 32], strides = [1, 1]} : vector<8x128xf32> to vector<8x32xf32>
    %125 = arith.mulf %122, %105 : vector<8x32xf32>
    %126 = arith.mulf %121, %123 : vector<8x32xf32>
    %127 = arith.addf %125, %126 : vector<8x32xf32>
    %128 = math.tanh %127 : vector<8x32xf32>
    %129 = arith.mulf %124, %128 : vector<8x32xf32>
    %130 = arith.index_cast %c4_i32 : i32 to index
    %c0_40 = arith.constant 0 : index
    %c0_41 = arith.constant 0 : index
    %131 = vector.load %arg12[%130, %c0_40, %c0_41] : memref<8x8x32xf32, #tpu.memory_space<vmem>>, vector<1x8x32xf32>
    %132 = vector.shape_cast %131 : vector<1x8x32xf32> to vector<8x32xf32>
    %133 = vector.shape_cast %129 : vector<8x32xf32> to vector<1x8x32xf32>
    tpu.vector_store %arg12[%130, %c0_40, %c0_41], %133 {strides = array<i32>} : memref<8x8x32xf32, #tpu.memory_space<vmem>>, vector<1x8x32xf32>,
    %c5_i32 = arith.constant 5 : i32
    %cst_42 = arith.constant dense<0.000000e+00> : vector<8x128xf32>
    %134 = tpu.matmul %129, %13, %cst_42 {dimension_numbers = #tpu.dot_dimension_numbers<[1], [0], [0], [1], [0, 0, 1, 1], [], []>} : vector<8x32xf32>, vector<32x128xf32>, vector<8x128xf32> -> vector<8x128xf32>
    %135 = arith.index_cast %c5_i32 : i32 to index
    %c0_43 = arith.constant 0 : index
    %c0_44 = arith.constant 0 : index
    %136 = vector.load %arg11[%135, %c0_43, %c0_44] : memref<8x8x128xf32, #tpu.memory_space<vmem>>, vector<1x8x128xf32>
    %137 = vector.shape_cast %136 : vector<1x8x128xf32> to vector<8x128xf32>
    %138 = arith.addf %134, %137 : vector<8x128xf32>
    %139 = arith.mulf %138, %8 : vector<8x128xf32>
    %140 = math.tanh %139 : vector<8x128xf32>
    %141 = arith.mulf %140, %8 : vector<8x128xf32>
    %142 = arith.addf %141, %11 : vector<8x128xf32>
    %143 = vector.extract_strided_slice %142 {offsets = [0, 0], sizes = [8, 32], strides = [1, 1]} : vector<8x128xf32> to vector<8x32xf32>
    %144 = vector.extract_strided_slice %142 {offsets = [0, 32], sizes = [8, 32], strides = [1, 1]} : vector<8x128xf32> to vector<8x32xf32>
    %145 = vector.extract_strided_slice %142 {offsets = [0, 64], sizes = [8, 32], strides = [1, 1]} : vector<8x128xf32> to vector<8x32xf32>
    %146 = vector.extract_strided_slice %142 {offsets = [0, 96], sizes = [8, 32], strides = [1, 1]} : vector<8x128xf32> to vector<8x32xf32>
    %147 = arith.mulf %144, %127 : vector<8x32xf32>
    %148 = arith.mulf %143, %145 : vector<8x32xf32>
    %149 = arith.addf %147, %148 : vector<8x32xf32>
    %150 = math.tanh %149 : vector<8x32xf32>
    %151 = arith.mulf %146, %150 : vector<8x32xf32>
    %152 = arith.index_cast %c5_i32 : i32 to index
    %c0_45 = arith.constant 0 : index
    %c0_46 = arith.constant 0 : index
    %153 = vector.load %arg12[%152, %c0_45, %c0_46] : memref<8x8x32xf32, #tpu.memory_space<vmem>>, vector<1x8x32xf32>
    %154 = vector.shape_cast %153 : vector<1x8x32xf32> to vector<8x32xf32>
    %155 = vector.shape_cast %151 : vector<8x32xf32> to vector<1x8x32xf32>
    tpu.vector_store %arg12[%152, %c0_45, %c0_46], %155 {strides = array<i32>} : memref<8x8x32xf32, #tpu.memory_space<vmem>>, vector<1x8x32xf32>,
    %c6_i32 = arith.constant 6 : i32
    %cst_47 = arith.constant dense<0.000000e+00> : vector<8x128xf32>
    %156 = tpu.matmul %151, %13, %cst_47 {dimension_numbers = #tpu.dot_dimension_numbers<[1], [0], [0], [1], [0, 0, 1, 1], [], []>} : vector<8x32xf32>, vector<32x128xf32>, vector<8x128xf32> -> vector<8x128xf32>
    %157 = arith.index_cast %c6_i32 : i32 to index
    %c0_48 = arith.constant 0 : index
    %c0_49 = arith.constant 0 : index
    %158 = vector.load %arg11[%157, %c0_48, %c0_49] : memref<8x8x128xf32, #tpu.memory_space<vmem>>, vector<1x8x128xf32>
    %159 = vector.shape_cast %158 : vector<1x8x128xf32> to vector<8x128xf32>
    %160 = arith.addf %156, %159 : vector<8x128xf32>
    %161 = arith.mulf %160, %8 : vector<8x128xf32>
    %162 = math.tanh %161 : vector<8x128xf32>
    %163 = arith.mulf %162, %8 : vector<8x128xf32>
    %164 = arith.addf %163, %11 : vector<8x128xf32>
    %165 = vector.extract_strided_slice %164 {offsets = [0, 0], sizes = [8, 32], strides = [1, 1]} : vector<8x128xf32> to vector<8x32xf32>
    %166 = vector.extract_strided_slice %164 {offsets = [0, 32], sizes = [8, 32], strides = [1, 1]} : vector<8x128xf32> to vector<8x32xf32>
    %167 = vector.extract_strided_slice %164 {offsets = [0, 64], sizes = [8, 32], strides = [1, 1]} : vector<8x128xf32> to vector<8x32xf32>
    %168 = vector.extract_strided_slice %164 {offsets = [0, 96], sizes = [8, 32], strides = [1, 1]} : vector<8x128xf32> to vector<8x32xf32>
    %169 = arith.mulf %166, %149 : vector<8x32xf32>
    %170 = arith.mulf %165, %167 : vector<8x32xf32>
    %171 = arith.addf %169, %170 : vector<8x32xf32>
    %172 = math.tanh %171 : vector<8x32xf32>
    %173 = arith.mulf %168, %172 : vector<8x32xf32>
    %174 = arith.index_cast %c6_i32 : i32 to index
    %c0_50 = arith.constant 0 : index
    %c0_51 = arith.constant 0 : index
    %175 = vector.load %arg12[%174, %c0_50, %c0_51] : memref<8x8x32xf32, #tpu.memory_space<vmem>>, vector<1x8x32xf32>
    %176 = vector.shape_cast %175 : vector<1x8x32xf32> to vector<8x32xf32>
    %177 = vector.shape_cast %173 : vector<8x32xf32> to vector<1x8x32xf32>
    tpu.vector_store %arg12[%174, %c0_50, %c0_51], %177 {strides = array<i32>} : memref<8x8x32xf32, #tpu.memory_space<vmem>>, vector<1x8x32xf32>,
    %c7_i32 = arith.constant 7 : i32
    %cst_52 = arith.constant dense<0.000000e+00> : vector<8x128xf32>
    %178 = tpu.matmul %173, %13, %cst_52 {dimension_numbers = #tpu.dot_dimension_numbers<[1], [0], [0], [1], [0, 0, 1, 1], [], []>} : vector<8x32xf32>, vector<32x128xf32>, vector<8x128xf32> -> vector<8x128xf32>
    %179 = arith.index_cast %c7_i32 : i32 to index
    %c0_53 = arith.constant 0 : index
    %c0_54 = arith.constant 0 : index
    %180 = vector.load %arg11[%179, %c0_53, %c0_54] : memref<8x8x128xf32, #tpu.memory_space<vmem>>, vector<1x8x128xf32>
    %181 = vector.shape_cast %180 : vector<1x8x128xf32> to vector<8x128xf32>
    %182 = arith.addf %178, %181 : vector<8x128xf32>
    %183 = arith.mulf %182, %8 : vector<8x128xf32>
    %184 = math.tanh %183 : vector<8x128xf32>
    %185 = arith.mulf %184, %8 : vector<8x128xf32>
    %186 = arith.addf %185, %11 : vector<8x128xf32>
    %187 = vector.extract_strided_slice %186 {offsets = [0, 0], sizes = [8, 32], strides = [1, 1]} : vector<8x128xf32> to vector<8x32xf32>
    %188 = vector.extract_strided_slice %186 {offsets = [0, 32], sizes = [8, 32], strides = [1, 1]} : vector<8x128xf32> to vector<8x32xf32>
    %189 = vector.extract_strided_slice %186 {offsets = [0, 64], sizes = [8, 32], strides = [1, 1]} : vector<8x128xf32> to vector<8x32xf32>
    %190 = vector.extract_strided_slice %186 {offsets = [0, 96], sizes = [8, 32], strides = [1, 1]} : vector<8x128xf32> to vector<8x32xf32>
    %191 = arith.mulf %188, %171 : vector<8x32xf32>
    %192 = arith.mulf %187, %189 : vector<8x32xf32>
    %193 = arith.addf %191, %192 : vector<8x32xf32>
    %194 = math.tanh %193 : vector<8x32xf32>
    %195 = arith.mulf %190, %194 : vector<8x32xf32>
    %196 = arith.index_cast %c7_i32 : i32 to index
    %c0_55 = arith.constant 0 : index
    %c0_56 = arith.constant 0 : index
    %197 = vector.load %arg12[%196, %c0_55, %c0_56] : memref<8x8x32xf32, #tpu.memory_space<vmem>>, vector<1x8x32xf32>
    %198 = vector.shape_cast %197 : vector<1x8x32xf32> to vector<8x32xf32>
    %199 = vector.shape_cast %195 : vector<8x32xf32> to vector<1x8x32xf32>
    tpu.vector_store %arg12[%196, %c0_55, %c0_56], %199 {strides = array<i32>} : memref<8x8x32xf32, #tpu.memory_space<vmem>>, vector<1x8x32xf32>,
    %c8_i32 = arith.constant 8 : i32
    %c0_57 = arith.constant 0 : index
    %c0_58 = arith.constant 0 : index
    %200 = vector.load %arg5[%c0_57, %c0_58] : memref<32x128xf32, #tpu.memory_space<vmem>>, vector<32x128xf32>
    %c0_59 = arith.constant 0 : index
    %c0_60 = arith.constant 0 : index
    %201 = vector.load %arg6[%c0_59, %c0_60] : memref<32x128xf32, #tpu.memory_space<vmem>>, vector<32x128xf32>
    %c0_61 = arith.constant 0 : index
    %c0_62 = arith.constant 0 : index
    %202 = vector.load %arg7[%c0_61, %c0_62] : memref<1x128xf32, #tpu.memory_space<vmem>>, vector<1x128xf32>
    %c0_63 = arith.constant 0 : index
    %c0_64 = arith.constant 0 : index
    %c0_65 = arith.constant 0 : index
    %203 = vector.load %arg12[%c0_63, %c0_64, %c0_65] : memref<8x8x32xf32, #tpu.memory_space<vmem>>, vector<8x8x32xf32>
    %204 = vector.shape_cast %203 : vector<8x8x32xf32> to vector<64x32xf32>
    %cst_66 = arith.constant dense<0.000000e+00> : vector<64x128xf32>
    %205 = tpu.matmul %204, %200, %cst_66 {dimension_numbers = #tpu.dot_dimension_numbers<[1], [0], [0], [1], [0, 0, 1, 1], [], []>} : vector<64x32xf32>, vector<32x128xf32>, vector<64x128xf32> -> vector<64x128xf32>
    %206 = vector.broadcast %202 : vector<1x128xf32> to vector<64x128xf32>
    %207 = arith.addf %205, %206 : vector<64x128xf32>
    %208 = vector.shape_cast %207 : vector<64x128xf32> to vector<8x8x128xf32>
    %c0_67 = arith.constant 0 : index
    %c0_68 = arith.constant 0 : index
    %c0_69 = arith.constant 0 : index
    %209 = vector.load %arg11[%c0_67, %c0_68, %c0_69] : memref<8x8x128xf32, #tpu.memory_space<vmem>>, vector<8x8x128xf32>
    tpu.vector_store %arg11[%c0_67, %c0_68, %c0_69], %208 {strides = array<i32>} : memref<8x8x128xf32, #tpu.memory_space<vmem>>, vector<8x8x128xf32>,
    %cst_70 = arith.constant 0.000000e+00 : f32
    %210 = vector.broadcast %cst_70 : f32 to vector<8x32xf32>
    %cst_71 = arith.constant 0.000000e+00 : f32
    %211 = vector.broadcast %cst_71 : f32 to vector<8x32xf32>
    %c0_i32_72 = arith.constant 0 : i32
    %cst_73 = arith.constant dense<0.000000e+00> : vector<8x128xf32>
    %212 = tpu.matmul %210, %201, %cst_73 {dimension_numbers = #tpu.dot_dimension_numbers<[1], [0], [0], [1], [0, 0, 1, 1], [], []>} : vector<8x32xf32>, vector<32x128xf32>, vector<8x128xf32> -> vector<8x128xf32>
    %213 = arith.index_cast %c0_i32_72 : i32 to index
    %c0_74 = arith.constant 0 : index
    %c0_75 = arith.constant 0 : index
    %214 = vector.load %arg11[%213, %c0_74, %c0_75] : memref<8x8x128xf32, #tpu.memory_space<vmem>>, vector<1x8x128xf32>
    %215 = vector.shape_cast %214 : vector<1x8x128xf32> to vector<8x128xf32>
    %216 = arith.addf %212, %215 : vector<8x128xf32>
    %217 = arith.mulf %216, %8 : vector<8x128xf32>
    %218 = math.tanh %217 : vector<8x128xf32>
    %219 = arith.mulf %218, %8 : vector<8x128xf32>
    %220 = arith.addf %219, %11 : vector<8x128xf32>
    %221 = vector.extract_strided_slice %220 {offsets = [0, 0], sizes = [8, 32], strides = [1, 1]} : vector<8x128xf32> to vector<8x32xf32>
    %222 = vector.extract_strided_slice %220 {offsets = [0, 32], sizes = [8, 32], strides = [1, 1]} : vector<8x128xf32> to vector<8x32xf32>
    %223 = vector.extract_strided_slice %220 {offsets = [0, 64], sizes = [8, 32], strides = [1, 1]} : vector<8x128xf32> to vector<8x32xf32>
    %224 = vector.extract_strided_slice %220 {offsets = [0, 96], sizes = [8, 32], strides = [1, 1]} : vector<8x128xf32> to vector<8x32xf32>
    %225 = arith.mulf %222, %211 : vector<8x32xf32>
    %226 = arith.mulf %221, %223 : vector<8x32xf32>
    %227 = arith.addf %225, %226 : vector<8x32xf32>
    %228 = math.tanh %227 : vector<8x32xf32>
    %229 = arith.mulf %224, %228 : vector<8x32xf32>
    %c1_i32_76 = arith.constant 1 : i32
    %cst_77 = arith.constant dense<0.000000e+00> : vector<8x128xf32>
    %230 = tpu.matmul %229, %201, %cst_77 {dimension_numbers = #tpu.dot_dimension_numbers<[1], [0], [0], [1], [0, 0, 1, 1], [], []>} : vector<8x32xf32>, vector<32x128xf32>, vector<8x128xf32> -> vector<8x128xf32>
    %231 = arith.index_cast %c1_i32_76 : i32 to index
    %c0_78 = arith.constant 0 : index
    %c0_79 = arith.constant 0 : index
    %232 = vector.load %arg11[%231, %c0_78, %c0_79] : memref<8x8x128xf32, #tpu.memory_space<vmem>>, vector<1x8x128xf32>
    %233 = vector.shape_cast %232 : vector<1x8x128xf32> to vector<8x128xf32>
    %234 = arith.addf %230, %233 : vector<8x128xf32>
    %235 = arith.mulf %234, %8 : vector<8x128xf32>
    %236 = math.tanh %235 : vector<8x128xf32>
    %237 = arith.mulf %236, %8 : vector<8x128xf32>
    %238 = arith.addf %237, %11 : vector<8x128xf32>
    %239 = vector.extract_strided_slice %238 {offsets = [0, 0], sizes = [8, 32], strides = [1, 1]} : vector<8x128xf32> to vector<8x32xf32>
    %240 = vector.extract_strided_slice %238 {offsets = [0, 32], sizes = [8, 32], strides = [1, 1]} : vector<8x128xf32> to vector<8x32xf32>
    %241 = vector.extract_strided_slice %238 {offsets = [0, 64], sizes = [8, 32], strides = [1, 1]} : vector<8x128xf32> to vector<8x32xf32>
    %242 = vector.extract_strided_slice %238 {offsets = [0, 96], sizes = [8, 32], strides = [1, 1]} : vector<8x128xf32> to vector<8x32xf32>
    %243 = arith.mulf %240, %227 : vector<8x32xf32>
    %244 = arith.mulf %239, %241 : vector<8x32xf32>
    %245 = arith.addf %243, %244 : vector<8x32xf32>
    %246 = math.tanh %245 : vector<8x32xf32>
    %247 = arith.mulf %242, %246 : vector<8x32xf32>
    %c2_i32_80 = arith.constant 2 : i32
    %cst_81 = arith.constant dense<0.000000e+00> : vector<8x128xf32>
    %248 = tpu.matmul %247, %201, %cst_81 {dimension_numbers = #tpu.dot_dimension_numbers<[1], [0], [0], [1], [0, 0, 1, 1], [], []>} : vector<8x32xf32>, vector<32x128xf32>, vector<8x128xf32> -> vector<8x128xf32>
    %249 = arith.index_cast %c2_i32_80 : i32 to index
    %c0_82 = arith.constant 0 : index
    %c0_83 = arith.constant 0 : index
    %250 = vector.load %arg11[%249, %c0_82, %c0_83] : memref<8x8x128xf32, #tpu.memory_space<vmem>>, vector<1x8x128xf32>
    %251 = vector.shape_cast %250 : vector<1x8x128xf32> to vector<8x128xf32>
    %252 = arith.addf %248, %251 : vector<8x128xf32>
    %253 = arith.mulf %252, %8 : vector<8x128xf32>
    %254 = math.tanh %253 : vector<8x128xf32>
    %255 = arith.mulf %254, %8 : vector<8x128xf32>
    %256 = arith.addf %255, %11 : vector<8x128xf32>
    %257 = vector.extract_strided_slice %256 {offsets = [0, 0], sizes = [8, 32], strides = [1, 1]} : vector<8x128xf32> to vector<8x32xf32>
    %258 = vector.extract_strided_slice %256 {offsets = [0, 32], sizes = [8, 32], strides = [1, 1]} : vector<8x128xf32> to vector<8x32xf32>
    %259 = vector.extract_strided_slice %256 {offsets = [0, 64], sizes = [8, 32], strides = [1, 1]} : vector<8x128xf32> to vector<8x32xf32>
    %260 = vector.extract_strided_slice %256 {offsets = [0, 96], sizes = [8, 32], strides = [1, 1]} : vector<8x128xf32> to vector<8x32xf32>
    %261 = arith.mulf %258, %245 : vector<8x32xf32>
    %262 = arith.mulf %257, %259 : vector<8x32xf32>
    %263 = arith.addf %261, %262 : vector<8x32xf32>
    %264 = math.tanh %263 : vector<8x32xf32>
    %265 = arith.mulf %260, %264 : vector<8x32xf32>
    %c3_i32_84 = arith.constant 3 : i32
    %cst_85 = arith.constant dense<0.000000e+00> : vector<8x128xf32>
    %266 = tpu.matmul %265, %201, %cst_85 {dimension_numbers = #tpu.dot_dimension_numbers<[1], [0], [0], [1], [0, 0, 1, 1], [], []>} : vector<8x32xf32>, vector<32x128xf32>, vector<8x128xf32> -> vector<8x128xf32>
    %267 = arith.index_cast %c3_i32_84 : i32 to index
    %c0_86 = arith.constant 0 : index
    %c0_87 = arith.constant 0 : index
    %268 = vector.load %arg11[%267, %c0_86, %c0_87] : memref<8x8x128xf32, #tpu.memory_space<vmem>>, vector<1x8x128xf32>
    %269 = vector.shape_cast %268 : vector<1x8x128xf32> to vector<8x128xf32>
    %270 = arith.addf %266, %269 : vector<8x128xf32>
    %271 = arith.mulf %270, %8 : vector<8x128xf32>
    %272 = math.tanh %271 : vector<8x128xf32>
    %273 = arith.mulf %272, %8 : vector<8x128xf32>
    %274 = arith.addf %273, %11 : vector<8x128xf32>
    %275 = vector.extract_strided_slice %274 {offsets = [0, 0], sizes = [8, 32], strides = [1, 1]} : vector<8x128xf32> to vector<8x32xf32>
    %276 = vector.extract_strided_slice %274 {offsets = [0, 32], sizes = [8, 32], strides = [1, 1]} : vector<8x128xf32> to vector<8x32xf32>
    %277 = vector.extract_strided_slice %274 {offsets = [0, 64], sizes = [8, 32], strides = [1, 1]} : vector<8x128xf32> to vector<8x32xf32>
    %278 = vector.extract_strided_slice %274 {offsets = [0, 96], sizes = [8, 32], strides = [1, 1]} : vector<8x128xf32> to vector<8x32xf32>
    %279 = arith.mulf %276, %263 : vector<8x32xf32>
    %280 = arith.mulf %275, %277 : vector<8x32xf32>
    %281 = arith.addf %279, %280 : vector<8x32xf32>
    %282 = math.tanh %281 : vector<8x32xf32>
    %283 = arith.mulf %278, %282 : vector<8x32xf32>
    %c4_i32_88 = arith.constant 4 : i32
    %cst_89 = arith.constant dense<0.000000e+00> : vector<8x128xf32>
    %284 = tpu.matmul %283, %201, %cst_89 {dimension_numbers = #tpu.dot_dimension_numbers<[1], [0], [0], [1], [0, 0, 1, 1], [], []>} : vector<8x32xf32>, vector<32x128xf32>, vector<8x128xf32> -> vector<8x128xf32>
    %285 = arith.index_cast %c4_i32_88 : i32 to index
    %c0_90 = arith.constant 0 : index
    %c0_91 = arith.constant 0 : index
    %286 = vector.load %arg11[%285, %c0_90, %c0_91] : memref<8x8x128xf32, #tpu.memory_space<vmem>>, vector<1x8x128xf32>
    %287 = vector.shape_cast %286 : vector<1x8x128xf32> to vector<8x128xf32>
    %288 = arith.addf %284, %287 : vector<8x128xf32>
    %289 = arith.mulf %288, %8 : vector<8x128xf32>
    %290 = math.tanh %289 : vector<8x128xf32>
    %291 = arith.mulf %290, %8 : vector<8x128xf32>
    %292 = arith.addf %291, %11 : vector<8x128xf32>
    %293 = vector.extract_strided_slice %292 {offsets = [0, 0], sizes = [8, 32], strides = [1, 1]} : vector<8x128xf32> to vector<8x32xf32>
    %294 = vector.extract_strided_slice %292 {offsets = [0, 32], sizes = [8, 32], strides = [1, 1]} : vector<8x128xf32> to vector<8x32xf32>
    %295 = vector.extract_strided_slice %292 {offsets = [0, 64], sizes = [8, 32], strides = [1, 1]} : vector<8x128xf32> to vector<8x32xf32>
    %296 = vector.extract_strided_slice %292 {offsets = [0, 96], sizes = [8, 32], strides = [1, 1]} : vector<8x128xf32> to vector<8x32xf32>
    %297 = arith.mulf %294, %281 : vector<8x32xf32>
    %298 = arith.mulf %293, %295 : vector<8x32xf32>
    %299 = arith.addf %297, %298 : vector<8x32xf32>
    %300 = math.tanh %299 : vector<8x32xf32>
    %301 = arith.mulf %296, %300 : vector<8x32xf32>
    %c5_i32_92 = arith.constant 5 : i32
    %cst_93 = arith.constant dense<0.000000e+00> : vector<8x128xf32>
    %302 = tpu.matmul %301, %201, %cst_93 {dimension_numbers = #tpu.dot_dimension_numbers<[1], [0], [0], [1], [0, 0, 1, 1], [], []>} : vector<8x32xf32>, vector<32x128xf32>, vector<8x128xf32> -> vector<8x128xf32>
    %303 = arith.index_cast %c5_i32_92 : i32 to index
    %c0_94 = arith.constant 0 : index
    %c0_95 = arith.constant 0 : index
    %304 = vector.load %arg11[%303, %c0_94, %c0_95] : memref<8x8x128xf32, #tpu.memory_space<vmem>>, vector<1x8x128xf32>
    %305 = vector.shape_cast %304 : vector<1x8x128xf32> to vector<8x128xf32>
    %306 = arith.addf %302, %305 : vector<8x128xf32>
    %307 = arith.mulf %306, %8 : vector<8x128xf32>
    %308 = math.tanh %307 : vector<8x128xf32>
    %309 = arith.mulf %308, %8 : vector<8x128xf32>
    %310 = arith.addf %309, %11 : vector<8x128xf32>
    %311 = vector.extract_strided_slice %310 {offsets = [0, 0], sizes = [8, 32], strides = [1, 1]} : vector<8x128xf32> to vector<8x32xf32>
    %312 = vector.extract_strided_slice %310 {offsets = [0, 32], sizes = [8, 32], strides = [1, 1]} : vector<8x128xf32> to vector<8x32xf32>
    %313 = vector.extract_strided_slice %310 {offsets = [0, 64], sizes = [8, 32], strides = [1, 1]} : vector<8x128xf32> to vector<8x32xf32>
    %314 = vector.extract_strided_slice %310 {offsets = [0, 96], sizes = [8, 32], strides = [1, 1]} : vector<8x128xf32> to vector<8x32xf32>
    %315 = arith.mulf %312, %299 : vector<8x32xf32>
    %316 = arith.mulf %311, %313 : vector<8x32xf32>
    %317 = arith.addf %315, %316 : vector<8x32xf32>
    %318 = math.tanh %317 : vector<8x32xf32>
    %319 = arith.mulf %314, %318 : vector<8x32xf32>
    %c6_i32_96 = arith.constant 6 : i32
    %cst_97 = arith.constant dense<0.000000e+00> : vector<8x128xf32>
    %320 = tpu.matmul %319, %201, %cst_97 {dimension_numbers = #tpu.dot_dimension_numbers<[1], [0], [0], [1], [0, 0, 1, 1], [], []>} : vector<8x32xf32>, vector<32x128xf32>, vector<8x128xf32> -> vector<8x128xf32>
    %321 = arith.index_cast %c6_i32_96 : i32 to index
    %c0_98 = arith.constant 0 : index
    %c0_99 = arith.constant 0 : index
    %322 = vector.load %arg11[%321, %c0_98, %c0_99] : memref<8x8x128xf32, #tpu.memory_space<vmem>>, vector<1x8x128xf32>
    %323 = vector.shape_cast %322 : vector<1x8x128xf32> to vector<8x128xf32>
    %324 = arith.addf %320, %323 : vector<8x128xf32>
    %325 = arith.mulf %324, %8 : vector<8x128xf32>
    %326 = math.tanh %325 : vector<8x128xf32>
    %327 = arith.mulf %326, %8 : vector<8x128xf32>
    %328 = arith.addf %327, %11 : vector<8x128xf32>
    %329 = vector.extract_strided_slice %328 {offsets = [0, 0], sizes = [8, 32], strides = [1, 1]} : vector<8x128xf32> to vector<8x32xf32>
    %330 = vector.extract_strided_slice %328 {offsets = [0, 32], sizes = [8, 32], strides = [1, 1]} : vector<8x128xf32> to vector<8x32xf32>
    %331 = vector.extract_strided_slice %328 {offsets = [0, 64], sizes = [8, 32], strides = [1, 1]} : vector<8x128xf32> to vector<8x32xf32>
    %332 = vector.extract_strided_slice %328 {offsets = [0, 96], sizes = [8, 32], strides = [1, 1]} : vector<8x128xf32> to vector<8x32xf32>
    %333 = arith.mulf %330, %317 : vector<8x32xf32>
    %334 = arith.mulf %329, %331 : vector<8x32xf32>
    %335 = arith.addf %333, %334 : vector<8x32xf32>
    %336 = math.tanh %335 : vector<8x32xf32>
    %337 = arith.mulf %332, %336 : vector<8x32xf32>
    %c7_i32_100 = arith.constant 7 : i32
    %cst_101 = arith.constant dense<0.000000e+00> : vector<8x128xf32>
    %338 = tpu.matmul %337, %201, %cst_101 {dimension_numbers = #tpu.dot_dimension_numbers<[1], [0], [0], [1], [0, 0, 1, 1], [], []>} : vector<8x32xf32>, vector<32x128xf32>, vector<8x128xf32> -> vector<8x128xf32>
    %339 = arith.index_cast %c7_i32_100 : i32 to index
    %c0_102 = arith.constant 0 : index
    %c0_103 = arith.constant 0 : index
    %340 = vector.load %arg11[%339, %c0_102, %c0_103] : memref<8x8x128xf32, #tpu.memory_space<vmem>>, vector<1x8x128xf32>
    %341 = vector.shape_cast %340 : vector<1x8x128xf32> to vector<8x128xf32>
    %342 = arith.addf %338, %341 : vector<8x128xf32>
    %343 = arith.mulf %342, %8 : vector<8x128xf32>
    %344 = math.tanh %343 : vector<8x128xf32>
    %345 = arith.mulf %344, %8 : vector<8x128xf32>
    %346 = arith.addf %345, %11 : vector<8x128xf32>
    %347 = vector.extract_strided_slice %346 {offsets = [0, 0], sizes = [8, 32], strides = [1, 1]} : vector<8x128xf32> to vector<8x32xf32>
    %348 = vector.extract_strided_slice %346 {offsets = [0, 32], sizes = [8, 32], strides = [1, 1]} : vector<8x128xf32> to vector<8x32xf32>
    %349 = vector.extract_strided_slice %346 {offsets = [0, 64], sizes = [8, 32], strides = [1, 1]} : vector<8x128xf32> to vector<8x32xf32>
    %350 = vector.extract_strided_slice %346 {offsets = [0, 96], sizes = [8, 32], strides = [1, 1]} : vector<8x128xf32> to vector<8x32xf32>
    %351 = arith.mulf %348, %335 : vector<8x32xf32>
    %352 = arith.mulf %347, %349 : vector<8x32xf32>
    %353 = arith.addf %351, %352 : vector<8x32xf32>
    %354 = math.tanh %353 : vector<8x32xf32>
    %355 = arith.mulf %350, %354 : vector<8x32xf32>
    %c8_i32_104 = arith.constant 8 : i32
    %c0_105 = arith.constant 0 : index
    %c0_106 = arith.constant 0 : index
    %356 = vector.load %arg8[%c0_105, %c0_106] : memref<32x128xf32, #tpu.memory_space<vmem>>, vector<32x128xf32>
    %cst_107 = arith.constant dense<0.000000e+00> : vector<8x128xf32>
    %357 = tpu.matmul %355, %356, %cst_107 {dimension_numbers = #tpu.dot_dimension_numbers<[1], [0], [0], [1], [0, 0, 1, 1], [], []>} : vector<8x32xf32>, vector<32x128xf32>, vector<8x128xf32> -> vector<8x128xf32>
    %c0_108 = arith.constant 0 : index
    %c0_109 = arith.constant 0 : index
    %358 = vector.load %arg9[%c0_108, %c0_109] : memref<1x128xf32, #tpu.memory_space<vmem>>, vector<1x128xf32>
    %359 = vector.broadcast %358 : vector<1x128xf32> to vector<8x128xf32>
    %360 = arith.addf %357, %359 : vector<8x128xf32>
    %c0_110 = arith.constant 0 : index
    %c0_111 = arith.constant 0 : index
    %361 = vector.load %arg10[%c0_110, %c0_111] : memref<8x128xf32, #tpu.memory_space<vmem>>, vector<8x128xf32>
    tpu.vector_store %arg10[%c0_110, %c0_111], %360 {strides = array<i32>} : memref<8x128xf32, #tpu.memory_space<vmem>>, vector<8x128xf32>,
    return
  }
  func.func @transform_0(%arg0: i32) -> (i32, i32, i32) {
    %c0_i32 = arith.constant 0 : i32
    %c0_i32_0 = arith.constant 0 : i32
    %c0_i32_1 = arith.constant 0 : i32
    return %c0_i32, %arg0, %c0_i32_0 : i32, i32, i32
  }
  func.func @transform_1(%arg0: i32) -> (i32, i32) {
    %c0_i32 = arith.constant 0 : i32
    %c0_i32_0 = arith.constant 0 : i32
    %c0_i32_1 = arith.constant 0 : i32
    return %c0_i32, %c0_i32_0 : i32, i32
  }
  func.func @transform_2(%arg0: i32) -> (i32, i32) {
    %c0_i32 = arith.constant 0 : i32
    %c0_i32_0 = arith.constant 0 : i32
    %c0_i32_1 = arith.constant 0 : i32
    return %c0_i32, %c0_i32_0 : i32, i32
  }
  func.func @transform_3(%arg0: i32) -> (i32, i32) {
    %c0_i32 = arith.constant 0 : i32
    %c0_i32_0 = arith.constant 0 : i32
    %c0_i32_1 = arith.constant 0 : i32
    return %c0_i32, %c0_i32_0 : i32, i32
  }
  func.func @transform_4(%arg0: i32) -> (i32, i32) {
    %c0_i32 = arith.constant 0 : i32
    %c0_i32_0 = arith.constant 0 : i32
    %c0_i32_1 = arith.constant 0 : i32
    return %c0_i32, %c0_i32_0 : i32, i32
  }
  func.func @transform_5(%arg0: i32) -> (i32, i32) {
    %c0_i32 = arith.constant 0 : i32
    %c0_i32_0 = arith.constant 0 : i32
    %c0_i32_1 = arith.constant 0 : i32
    return %c0_i32, %c0_i32_0 : i32, i32
  }
  func.func @transform_6(%arg0: i32) -> (i32, i32) {
    %c0_i32 = arith.constant 0 : i32
    %c0_i32_0 = arith.constant 0 : i32
    %c0_i32_1 = arith.constant 0 : i32
    return %c0_i32, %c0_i32_0 : i32, i32
  }
  func.func @transform_7(%arg0: i32) -> (i32, i32) {
    %c0_i32 = arith.constant 0 : i32
    %c0_i32_0 = arith.constant 0 : i32
    %c0_i32_1 = arith.constant 0 : i32
    return %c0_i32, %c0_i32_0 : i32, i32
  }
  func.func @transform_8(%arg0: i32) -> (i32, i32) {
    %c0_i32 = arith.constant 0 : i32
    %c0_i32_0 = arith.constant 0 : i32
    %c0_i32_1 = arith.constant 0 : i32
    return %c0_i32, %c0_i32_0 : i32, i32
  }
  func.func @transform_9(%arg0: i32) -> (i32, i32) {
    %c0_i32 = arith.constant 0 : i32
    %c0_i32_0 = arith.constant 0 : i32
    return %arg0, %c0_i32 : i32, i32
  }
}

</mosaic_0001>

<llo_original>
// kernel: lstm_model_forward.1
$region0: #{lstm_model_forward.1}
  #allocation0 [shape = 'u32[]', space=smem, size = 0x4, offset = 0x4, fixed_abs, tag = 'smem constant byte address 0x4 - core index']
  #allocation1 [shape = 'u32[144,128]{1,0:T(1,128)}', space=vmem, size = 0x12000, scoped, tag = 'internal scratch']
  #allocation2 [shape = 'f32[8,8,128]{2,1,0:T(8,128)}', space=vmem, size = 0x8000, scoped, tag = 'scratch operand']
  #allocation3 [shape = 'f32[8,8,32]{2,1,0:T(8,128)}', space=vmem, size = 0x8000, scoped, tag = 'scratch operand']
  %s0 = inlined_call_operand.vmem [shape: f32[8,8,16], index: 0, kind: input, shape index: {}]
  %s1 = inlined_call_operand.vmem [shape: f32[16,128], index: 1, kind: input, shape index: {}]
  %s2 = inlined_call_operand.vmem [shape: f32[32,128], index: 2, kind: input, shape index: {}]
  %s3 = inlined_call_operand.vmem [shape: f32[1,128], index: 3, kind: input, shape index: {}]
  %s4 = inlined_call_operand.vmem [shape: f32[32,128], index: 4, kind: input, shape index: {}]
  %s5 = inlined_call_operand.vmem [shape: f32[32,128], index: 5, kind: input, shape index: {}]
  %s6 = inlined_call_operand.vmem [shape: f32[1,128], index: 6, kind: input, shape index: {}]
  %s7 = inlined_call_operand.vmem [shape: f32[32,128], index: 7, kind: input, shape index: {}]
  %s8 = inlined_call_operand.vmem [shape: f32[1,128], index: 8, kind: input, shape index: {}]
  %s9 = inlined_call_operand.vmem [shape: f32[8,128], index: 9, kind: output, shape index: {}]
  %s10 = sld [smem:[#allocation0]]
  $region46: #{lstm_model_forward.1} parent=0
    _
  %s12 = ssub.s32 1, %s10
  %s13 = scalar_select 0, %s12, %s10
  // Predicated region
  $region2: #{lstm_model_forward.1} parent=0 // pred_check
    _
  $region3: #{lstm_model_forward.1} parent=0 // pred_check_branch
    %15 = sbr.rel (0) target = $region5
  $region4: #{lstm_model_forward.1} parent=0 // pred_region
    _
  $region5: #{lstm_model_forward.1} parent=0 // pred_fallthru
    _
  // Predicated region
  $region6: #{lstm_model_forward.1} parent=0 // pred_check
    _
  $region7: #{lstm_model_forward.1} parent=0 // pred_check_branch
    %17 = sbr.rel (0) target = $region9
  $region8: #{lstm_model_forward.1} parent=0 // pred_region
    _
  $region9: #{lstm_model_forward.1} parent=0 // pred_fallthru
    _
  // Predicated region
  $region10: #{lstm_model_forward.1} parent=0 // pred_check
    _
  $region11: #{lstm_model_forward.1} parent=0 // pred_check_branch
    %19 = sbr.rel (0) target = $region13
  $region12: #{lstm_model_forward.1} parent=0 // pred_region
    _
  $region13: #{lstm_model_forward.1} parent=0 // pred_fallthru
    _
  // Predicated region
  $region14: #{lstm_model_forward.1} parent=0 // pred_check
    _
  $region15: #{lstm_model_forward.1} parent=0 // pred_check_branch
    %21 = sbr.rel (0) target = $region17
  $region16: #{lstm_model_forward.1} parent=0 // pred_region
    _
  $region17: #{lstm_model_forward.1} parent=0 // pred_fallthru
    _
  // Predicated region
  $region18: #{lstm_model_forward.1} parent=0 // pred_check
    _
  $region19: #{lstm_model_forward.1} parent=0 // pred_check_branch
    %23 = sbr.rel (0) target = $region21
  $region20: #{lstm_model_forward.1} parent=0 // pred_region
    _
  $region21: #{lstm_model_forward.1} parent=0 // pred_fallthru
    _
  // Predicated region
  $region22: #{lstm_model_forward.1} parent=0 // pred_check
    _
  $region23: #{lstm_model_forward.1} parent=0 // pred_check_branch
    %25 = sbr.rel (0) target = $region25
  $region24: #{lstm_model_forward.1} parent=0 // pred_region
    _
  $region25: #{lstm_model_forward.1} parent=0 // pred_fallthru
    _
  // Predicated region
  $region26: #{lstm_model_forward.1} parent=0 // pred_check
    _
  $region27: #{lstm_model_forward.1} parent=0 // pred_check_branch
    %27 = sbr.rel (0) target = $region29
  $region28: #{lstm_model_forward.1} parent=0 // pred_region
    _
  $region29: #{lstm_model_forward.1} parent=0 // pred_fallthru
    _
  // Predicated region
  $region30: #{lstm_model_forward.1} parent=0 // pred_check
    _
  $region31: #{lstm_model_forward.1} parent=0 // pred_check_branch
    %29 = sbr.rel (0) target = $region33
  $region32: #{lstm_model_forward.1} parent=0 // pred_region
    _
  $region33: #{lstm_model_forward.1} parent=0 // pred_fallthru
    _
  // Predicated region
  $region34: #{lstm_model_forward.1} parent=0 // pred_check
    _
  $region35: #{lstm_model_forward.1} parent=0 // pred_check_branch
    %31 = sbr.rel (0) target = $region37
  $region36: #{lstm_model_forward.1} parent=0 // pred_region
    _
  $region37: #{lstm_model_forward.1} parent=0 // pred_fallthru
    _
  %v32 = vlaneseq
  %v33 = vand.u32 %v32, 127
  %vm34 = vcmp.ge.s32.totalorder %v33, 64
  %vm35 = vcmp.lt.s32.totalorder %v33, 96
  %vm36 = vmand %vm34, %vm35
  %v37 = vsel %vm36, 1.0, 0.5
  %v38 = vsel %vm36, 0.0, 0.5
  %v39 = vld [vmem:[%s1] sm:$0xff]
  %v40 = vld [vmem:[%s1 + $0x8] sm:$0xff]
  %v41 = vld [vmem:[%s2] sm:$0xff]
  %v42 = vld [vmem:[%s2 + $0x8] sm:$0xff]
  %v43 = vld [vmem:[%s2 + $0x10] sm:$0xff]
  %v44 = vld [vmem:[%s2 + $0x18] sm:$0xff]
  %v45 = vld [vmem:[%s3] sm:$0x1]
  %v46 = vld [vmem:[%s0] sm:$0xff]
  %v47 = vld [vmem:[%s0 + $0x8] sm:$0xff]
  %v48 = vld [vmem:[%s0 + $0x10] sm:$0xff]
  %v49 = vld [vmem:[%s0 + $0x18] sm:$0xff]
  %v50 = vld [vmem:[%s0 + $0x20] sm:$0xff]
  %v51 = vld [vmem:[%s0 + $0x28] sm:$0xff]
  %v52 = vld [vmem:[%s0 + $0x30] sm:$0xff]
  %v53 = vld [vmem:[%s0 + $0x38] sm:$0xff]
  %v55 = vlaneseq
  %v56 = vshrl.u32 %v55, 7
  %v57 = vsub.s32 0, %v56
  %v58 = vrot.slane %v45, %v57
  %vm60 = vcmask 130048
  %v62 = vsel %vm60, %v46, 0
  %v65 = vsel %vm60, %v47, 0
  %v68 = vsel %vm60, %v48, 0
  %v71 = vsel %vm60, %v49, 0
  %v74 = vsel %vm60, %v50, 0
  %v77 = vsel %vm60, %v51, 0
  %v80 = vsel %vm60, %v52, 0
  %v83 = vsel %vm60, %v53, 0
  %85 = vmatprep.subr.mxu0 0.0
  %86 = vmatpush1.msra.mxu0 %v39
  %87 = vmatprep.subr.mxu0 0.0
  %88 = vmatpush1.msra.mxu0 %v40
  %89 = vmatprep.subr.mxu0 0.0
  %90 = vmatpush1.msra.mxu0 0.0
  %91 = vmatprep.subr.mxu0 0.0
  %92 = vmatpush1.msra.mxu0 0.0
  %93 = vmatprep.subr.mxu0 0.0
  %94 = vmatpush1.msra.mxu0 0.0
  %95 = vmatprep.subr.mxu0 0.0
  %96 = vmatpush1.msra.mxu0 0.0
  %97 = vmatprep.subr.mxu0 0.0
  %98 = vmatpush1.msra.mxu0 0.0
  %99 = vmatprep.subr.mxu0 0.0
  %100 = vmatpush1.msra.mxu0 0.0
  %101 = vmatprep.subr.mxu0 0.0
  %102 = vmatpush1.msra.mxu0 0.0
  %103 = vmatprep.subr.mxu0 0.0
  %104 = vmatpush1.msra.mxu0 0.0
  %105 = vmatprep.subr.mxu0 0.0
  %106 = vmatpush1.msra.mxu0 0.0
  %107 = vmatprep.subr.mxu0 0.0
  %108 = vmatpush1.msra.mxu0 0.0
  %109 = vmatprep.subr.mxu0 0.0
  %110 = vmatpush1.msra.mxu0 0.0
  %111 = vmatprep.subr.mxu0 0.0
  %112 = vmatpush1.msra.mxu0 0.0
  %113 = vmatprep.subr.mxu0 0.0
  %114 = vmatpush1.msra.mxu0 0.0
  %115 = vmatprep.subr.mxu0 0.0
  %116 = vmatpush1.msra.mxu0 0.0
  %117 = vmatprep.subr.mxu0 0.0
  %118 = vmatpush1.msra.mxu0 0.0
  %119 = vmatprep.subr.mxu0 0.0
  %120 = vmatpush1.msra.mxu0 0.0
  %121 = vmatprep.subr.mxu0 0.0
  %122 = vmatpush1.msra.mxu0 0.0
  %123 = vmatprep.subr.mxu0 0.0
  %124 = vmatpush1.msra.mxu0 0.0
  %125 = vmatprep.subr.mxu0 0.0
  %126 = vmatpush1.msra.mxu0 0.0
  %127 = vmatprep.subr.mxu0 0.0
  %128 = vmatpush1.msra.mxu0 0.0
  %129 = vmatprep.subr.mxu0 0.0
  %130 = vmatpush1.msra.mxu0 0.0
  %131 = vmatprep.subr.mxu0 0.0
  %132 = vmatpush1.msra.mxu0 0.0
  %133 = vmatprep.subr.mxu0 0.0
  %134 = vmatpush1.msra.mxu0 0.0
  %135 = vmatprep.subr.mxu0 0.0
  %136 = vmatpush1.msra.mxu0 0.0
  %137 = vmatprep.subr.mxu0 0.0
  %138 = vmatpush1.msra.mxu0 0.0
  %139 = vmatprep.subr.mxu0 0.0
  %140 = vmatpush1.msra.mxu0 0.0
  %141 = vmatprep.subr.mxu0 0.0
  %142 = vmatpush1.msra.mxu0 0.0
  %143 = vmatprep.subr.mxu0 0.0
  %144 = vmatpush1.msra.mxu0 0.0
  %145 = vmatprep.subr.mxu0 0.0
  %146 = vmatpush1.msra.mxu0 0.0
  %147 = vmatprep.subr.mxu0 0.0
  %148 = vmatpush1.msra.mxu0 0.0
  %149 = vmatprep.mubr.f32.mxu0 0.0
  %150 = vmatmul.mubr.f32.gmra.mrb[0].mxu0 %v62
  %v151 = vpop.f32.mrb[0].mxu0
  %v152 = vadd.f32 %v58, %v151
  %v153 = vpop.f32.mrb[0].mxu0
  %154 = vmatprep.mubr.f32.mxu0 0.0
  %155 = vmatmul.mubr.f32.gmra.mrb[0].mxu0 %v65
  %v156 = vpop.f32.mrb[0].mxu0
  %v157 = vadd.f32 %v58, %v156
  %v158 = vpop.f32.mrb[0].mxu0
  %159 = vmatprep.mubr.f32.mxu0 0.0
  %160 = vmatmul.mubr.f32.gmra.mrb[0].mxu0 %v68
  %v161 = vpop.f32.mrb[0].mxu0
  %v162 = vadd.f32 %v58, %v161
  %v163 = vpop.f32.mrb[0].mxu0
  %164 = vmatprep.mubr.f32.mxu0 0.0
  %165 = vmatmul.mubr.f32.gmra.mrb[0].mxu0 %v71
  %v166 = vpop.f32.mrb[0].mxu0
  %v167 = vadd.f32 %v58, %v166
  %v168 = vpop.f32.mrb[0].mxu0
  %169 = vmatprep.mubr.f32.mxu0 0.0
  %170 = vmatmul.mubr.f32.gmra.mrb[0].mxu0 %v74
  %v171 = vpop.f32.mrb[0].mxu0
  %v172 = vadd.f32 %v58, %v171
  %v173 = vpop.f32.mrb[0].mxu0
  %174 = vmatprep.mubr.f32.mxu0 0.0
  %175 = vmatmul.mubr.f32.gmra.mrb[0].mxu0 %v77
  %v176 = vpop.f32.mrb[0].mxu0
  %v177 = vadd.f32 %v58, %v176
  %v178 = vpop.f32.mrb[0].mxu0
  %179 = vmatprep.mubr.f32.mxu0 0.0
  %180 = vmatmul.mubr.f32.gmra.mrb[0].mxu0 %v80
  %v181 = vpop.f32.mrb[0].mxu0
  %v182 = vadd.f32 %v58, %v181
  %v183 = vpop.f32.mrb[0].mxu0
  %184 = vmatprep.mubr.f32.mxu0 0.0
  %185 = vmatmul.mubr.f32.gmra.mrb[0].mxu0 %v83
  %v186 = vpop.f32.mrb[0].mxu0
  %v187 = vadd.f32 %v58, %v186
  %v188 = vpop.f32.mrb[0].mxu0
  %189 = vdwg.mxu0
  %190 = vst [vmem:[#allocation2] sm:$0xff] %v152
  %191 = vst [vmem:[#allocation2 + $0x8] sm:$0xff] %v157
  %192 = vst [vmem:[#allocation2 + $0x10] sm:$0xff] %v162
  %193 = vst [vmem:[#allocation2 + $0x18] sm:$0xff] %v167
  %194 = vst [vmem:[#allocation2 + $0x20] sm:$0xff] %v172
  %195 = vst [vmem:[#allocation2 + $0x28] sm:$0xff] %v177
  %196 = vst [vmem:[#allocation2 + $0x30] sm:$0xff] %v182
  %197 = vst [vmem:[#allocation2 + $0x38] sm:$0xff] %v187
  %v198 = vld [vmem:[#allocation2] sm:$0xff]
  %vm199 = vcmask 261120
  %v201 = vsel %vm199, 0.0, 0
  %203 = vmatprep.subr.mxu0 0.0
  %204 = vmatpush1.msra.mxu0 %v41
  %205 = vmatprep.subr.mxu0 0.0
  %206 = vmatpush1.msra.mxu0 %v42
  %207 = vmatprep.subr.mxu0 0.0
  %208 = vmatpush1.msra.mxu0 %v43
  %209 = vmatprep.subr.mxu0 0.0
  %210 = vmatpush1.msra.mxu0 %v44
  %211 = vmatprep.subr.mxu0 0.0
  %212 = vmatpush1.msra.mxu0 0.0
  %213 = vmatprep.subr.mxu0 0.0
  %214 = vmatpush1.msra.mxu0 0.0
  %215 = vmatprep.subr.mxu0 0.0
  %216 = vmatpush1.msra.mxu0 0.0
  %217 = vmatprep.subr.mxu0 0.0
  %218 = vmatpush1.msra.mxu0 0.0
  %219 = vmatprep.subr.mxu0 0.0
  %220 = vmatpush1.msra.mxu0 0.0
  %221 = vmatprep.subr.mxu0 0.0
  %222 = vmatpush1.msra.mxu0 0.0
  %223 = vmatprep.subr.mxu0 0.0
  %224 = vmatpush1.msra.mxu0 0.0
  %225 = vmatprep.subr.mxu0 0.0
  %226 = vmatpush1.msra.mxu0 0.0
  %227 = vmatprep.subr.mxu0 0.0
  %228 = vmatpush1.msra.mxu0 0.0
  %229 = vmatprep.subr.mxu0 0.0
  %230 = vmatpush1.msra.mxu0 0.0
  %231 = vmatprep.subr.mxu0 0.0
  %232 = vmatpush1.msra.mxu0 0.0
  %233 = vmatprep.subr.mxu0 0.0
  %234 = vmatpush1.msra.mxu0 0.0
  %235 = vmatprep.subr.mxu0 0.0
  %236 = vmatpush1.msra.mxu0 0.0
  %237 = vmatprep.subr.mxu0 0.0
  %238 = vmatpush1.msra.mxu0 0.0
  %239 = vmatprep.subr.mxu0 0.0
  %240 = vmatpush1.msra.mxu0 0.0
  %241 = vmatprep.subr.mxu0 0.0
  %242 = vmatpush1.msra.mxu0 0.0
  %243 = vmatprep.subr.mxu0 0.0
  %244 = vmatpush1.msra.mxu0 0.0
  %245 = vmatprep.subr.mxu0 0.0
  %246 = vmatpush1.msra.mxu0 0.0
  %247 = vmatprep.subr.mxu0 0.0
  %248 = vmatpush1.msra.mxu0 0.0
  %249 = vmatprep.subr.mxu0 0.0
  %250 = vmatpush1.msra.mxu0 0.0
  %251 = vmatprep.subr.mxu0 0.0
  %252 = vmatpush1.msra.mxu0 0.0
  %253 = vmatprep.subr.mxu0 0.0
  %254 = vmatpush1.msra.mxu0 0.0
  %255 = vmatprep.subr.mxu0 0.0
  %256 = vmatpush1.msra.mxu0 0.0
  %257 = vmatprep.subr.mxu0 0.0
  %258 = vmatpush1.msra.mxu0 0.0
  %259 = vmatprep.subr.mxu0 0.0
  %260 = vmatpush1.msra.mxu0 0.0
  %261 = vmatprep.subr.mxu0 0.0
  %262 = vmatpush1.msra.mxu0 0.0
  %263 = vmatprep.subr.mxu0 0.0
  %264 = vmatpush1.msra.mxu0 0.0
  %265 = vmatprep.subr.mxu0 0.0
  %266 = vmatpush1.msra.mxu0 0.0
  %267 = vmatprep.mubr.f32.mxu0 0.0
  %268 = vmatmul.mubr.f32.gmra.mrb[0].mxu0 %v201
  %v269 = vpop.f32.mrb[0].mxu0
  %v270 = vadd.f32 %v198, %v269
  %v271 = vpop.f32.mrb[0].mxu0
  %272 = vdwg.mxu0
  %v273 = vmul.f32 %v270, %v37
  %v274 = vtanh.pop %v273
  %v275 = vmul.f32 %v274, %v37
  %v276 = vadd.f32 %v275, %v38
  %v277 = vmul.f32 %v276, 0.0
  %279 = vrot.lane.b32.xlu0 %v276, 64
  %v280 = vpop.permute.xlu0 %279
  %v282 = vmul.f32 %v276, %v280
  %284 = vrot.lane.b32.xlu0 %v282, 32
  %v285 = vpop.permute.xlu0 %284
  %v287 = vadd.f32 %v277, %v285
  %v288 = vtanh.pop %v287
  %290 = vrot.lane.b32.xlu0 %v288, 64
  %v291 = vpop.permute.xlu0 %290
  %v293 = vmul.f32 %v276, %v291
  %295 = vrot.lane.b32.xlu0 %v293, 32
  %v296 = vpop.permute.xlu0 %295
  %298 = vst.msk [vmem:[#allocation3] sm:$0xff] %vm199, %v296
  %s299 = scalar_lea.vmem [#allocation2], 8
  %v300 = vld [vmem:[%s299] sm:$0xff]
  %v301 = vsel %vm199, %v296, 0
  %303 = vmatprep.subr.mxu0 0.0
  %304 = vmatpush1.msra.mxu0 %v41
  %305 = vmatprep.subr.mxu0 0.0
  %306 = vmatpush1.msra.mxu0 %v42
  %307 = vmatprep.subr.mxu0 0.0
  %308 = vmatpush1.msra.mxu0 %v43
  %309 = vmatprep.subr.mxu0 0.0
  %310 = vmatpush1.msra.mxu0 %v44
  %311 = vmatprep.subr.mxu0 0.0
  %312 = vmatpush1.msra.mxu0 0.0
  %313 = vmatprep.subr.mxu0 0.0
  %314 = vmatpush1.msra.mxu0 0.0
  %315 = vmatprep.subr.mxu0 0.0
  %316 = vmatpush1.msra.mxu0 0.0
  %317 = vmatprep.subr.mxu0 0.0
  %318 = vmatpush1.msra.mxu0 0.0
  %319 = vmatprep.subr.mxu0 0.0
  %320 = vmatpush1.msra.mxu0 0.0
  %321 = vmatprep.subr.mxu0 0.0
  %322 = vmatpush1.msra.mxu0 0.0
  %323 = vmatprep.subr.mxu0 0.0
  %324 = vmatpush1.msra.mxu0 0.0
  %325 = vmatprep.subr.mxu0 0.0
  %326 = vmatpush1.msra.mxu0 0.0
  %327 = vmatprep.subr.mxu0 0.0
  %328 = vmatpush1.msra.mxu0 0.0
  %329 = vmatprep.subr.mxu0 0.0
  %330 = vmatpush1.msra.mxu0 0.0
  %331 = vmatprep.subr.mxu0 0.0
  %332 = vmatpush1.msra.mxu0 0.0
  %333 = vmatprep.subr.mxu0 0.0
  %334 = vmatpush1.msra.mxu0 0.0
  %335 = vmatprep.subr.mxu0 0.0
  %336 = vmatpush1.msra.mxu0 0.0
  %337 = vmatprep.subr.mxu0 0.0
  %338 = vmatpush1.msra.mxu0 0.0
  %339 = vmatprep.subr.mxu0 0.0
  %340 = vmatpush1.msra.mxu0 0.0
  %341 = vmatprep.subr.mxu0 0.0
  %342 = vmatpush1.msra.mxu0 0.0
  %343 = vmatprep.subr.mxu0 0.0
  %344 = vmatpush1.msra.mxu0 0.0
  %345 = vmatprep.subr.mxu0 0.0
  %346 = vmatpush1.msra.mxu0 0.0
  %347 = vmatprep.subr.mxu0 0.0
  %348 = vmatpush1.msra.mxu0 0.0
  %349 = vmatprep.subr.mxu0 0.0
  %350 = vmatpush1.msra.mxu0 0.0
  %351 = vmatprep.subr.mxu0 0.0
  %352 = vmatpush1.msra.mxu0 0.0
  %353 = vmatprep.subr.mxu0 0.0
  %354 = vmatpush1.msra.mxu0 0.0
  %355 = vmatprep.subr.mxu0 0.0
  %356 = vmatpush1.msra.mxu0 0.0
  %357 = vmatprep.subr.mxu0 0.0
  %358 = vmatpush1.msra.mxu0 0.0
  %359 = vmatprep.subr.mxu0 0.0
  %360 = vmatpush1.msra.mxu0 0.0
  %361 = vmatprep.subr.mxu0 0.0
  %362 = vmatpush1.msra.mxu0 0.0
  %363 = vmatprep.subr.mxu0 0.0
  %364 = vmatpush1.msra.mxu0 0.0
  %365 = vmatprep.subr.mxu0 0.0
  %366 = vmatpush1.msra.mxu0 0.0
  %367 = vmatprep.mubr.f32.mxu0 0.0
  %368 = vmatmul.mubr.f32.gmra.mrb[0].mxu0 %v301
  %v369 = vpop.f32.mrb[0].mxu0
  %v370 = vadd.f32 %v300, %v369
  %v371 = vpop.f32.mrb[0].mxu0
  %372 = vdwg.mxu0
  %v373 = vmul.f32 %v370, %v37
  %v374 = vtanh.pop %v373
  %v375 = vmul.f32 %v374, %v37
  %v376 = vadd.f32 %v375, %v38
  %v377 = vmul.f32 %v376, %v287
  %379 = vrot.lane.b32.xlu0 %v376, 64
  %v380 = vpop.permute.xlu0 %379
  %v382 = vmul.f32 %v376, %v380
  %384 = vrot.lane.b32.xlu0 %v382, 32
  %v385 = vpop.permute.xlu0 %384
  %v387 = vadd.f32 %v377, %v385
  %v388 = vtanh.pop %v387
  %390 = vrot.lane.b32.xlu0 %v388, 64
  %v391 = vpop.permute.xlu0 %390
  %v393 = vmul.f32 %v376, %v391
  %395 = vrot.lane.b32.xlu0 %v393, 32
  %v396 = vpop.permute.xlu0 %395
  %s398 = scalar_lea.vmem [#allocation3], 8
  %399 = vst.msk [vmem:[%s398] sm:$0xff] %vm199, %v396
  %s400 = scalar_lea.vmem [#allocation2], 16
  %v401 = vld [vmem:[%s400] sm:$0xff]
  %v402 = vsel %vm199, %v396, 0
  %404 = vmatprep.subr.mxu0 0.0
  %405 = vmatpush1.msra.mxu0 %v41
  %406 = vmatprep.subr.mxu0 0.0
  %407 = vmatpush1.msra.mxu0 %v42
  %408 = vmatprep.subr.mxu0 0.0
  %409 = vmatpush1.msra.mxu0 %v43
  %410 = vmatprep.subr.mxu0 0.0
  %411 = vmatpush1.msra.mxu0 %v44
  %412 = vmatprep.subr.mxu0 0.0
  %413 = vmatpush1.msra.mxu0 0.0
  %414 = vmatprep.subr.mxu0 0.0
  %415 = vmatpush1.msra.mxu0 0.0
  %416 = vmatprep.subr.mxu0 0.0
  %417 = vmatpush1.msra.mxu0 0.0
  %418 = vmatprep.subr.mxu0 0.0
  %419 = vmatpush1.msra.mxu0 0.0
  %420 = vmatprep.subr.mxu0 0.0
  %421 = vmatpush1.msra.mxu0 0.0
  %422 = vmatprep.subr.mxu0 0.0
  %423 = vmatpush1.msra.mxu0 0.0
  %424 = vmatprep.subr.mxu0 0.0
  %425 = vmatpush1.msra.mxu0 0.0
  %426 = vmatprep.subr.mxu0 0.0
  %427 = vmatpush1.msra.mxu0 0.0
  %428 = vmatprep.subr.mxu0 0.0
  %429 = vmatpush1.msra.mxu0 0.0
  %430 = vmatprep.subr.mxu0 0.0
  %431 = vmatpush1.msra.mxu0 0.0
  %432 = vmatprep.subr.mxu0 0.0
  %433 = vmatpush1.msra.mxu0 0.0
  %434 = vmatprep.subr.mxu0 0.0
  %435 = vmatpush1.msra.mxu0 0.0
  %436 = vmatprep.subr.mxu0 0.0
  %437 = vmatpush1.msra.mxu0 0.0
  %438 = vmatprep.subr.mxu0 0.0
  %439 = vmatpush1.msra.mxu0 0.0
  %440 = vmatprep.subr.mxu0 0.0
  %441 = vmatpush1.msra.mxu0 0.0
  %442 = vmatprep.subr.mxu0 0.0
  %443 = vmatpush1.msra.mxu0 0.0
  %444 = vmatprep.subr.mxu0 0.0
  %445 = vmatpush1.msra.mxu0 0.0
  %446 = vmatprep.subr.mxu0 0.0
  %447 = vmatpush1.msra.mxu0 0.0
  %448 = vmatprep.subr.mxu0 0.0
  %449 = vmatpush1.msra.mxu0 0.0
  %450 = vmatprep.subr.mxu0 0.0
  %451 = vmatpush1.msra.mxu0 0.0
  %452 = vmatprep.subr.mxu0 0.0
  %453 = vmatpush1.msra.mxu0 0.0
  %454 = vmatprep.subr.mxu0 0.0
  %455 = vmatpush1.msra.mxu0 0.0
  %456 = vmatprep.subr.mxu0 0.0
  %457 = vmatpush1.msra.mxu0 0.0
  %458 = vmatprep.subr.mxu0 0.0
  %459 = vmatpush1.msra.mxu0 0.0
  %460 = vmatprep.subr.mxu0 0.0
  %461 = vmatpush1.msra.mxu0 0.0
  %462 = vmatprep.subr.mxu0 0.0
  %463 = vmatpush1.msra.mxu0 0.0
  %464 = vmatprep.subr.mxu0 0.0
  %465 = vmatpush1.msra.mxu0 0.0
  %466 = vmatprep.subr.mxu0 0.0
  %467 = vmatpush1.msra.mxu0 0.0
  %468 = vmatprep.mubr.f32.mxu0 0.0
  %469 = vmatmul.mubr.f32.gmra.mrb[0].mxu0 %v402
  %v470 = vpop.f32.mrb[0].mxu0
  %v471 = vadd.f32 %v401, %v470
  %v472 = vpop.f32.mrb[0].mxu0
  %473 = vdwg.mxu0
  %v474 = vmul.f32 %v471, %v37
  %v475 = vtanh.pop %v474
  %v476 = vmul.f32 %v475, %v37
  %v477 = vadd.f32 %v476, %v38
  %v478 = vmul.f32 %v477, %v387
  %480 = vrot.lane.b32.xlu0 %v477, 64
  %v481 = vpop.permute.xlu0 %480
  %v483 = vmul.f32 %v477, %v481
  %485 = vrot.lane.b32.xlu0 %v483, 32
  %v486 = vpop.permute.xlu0 %485
  %v488 = vadd.f32 %v478, %v486
  %v489 = vtanh.pop %v488
  %491 = vrot.lane.b32.xlu0 %v489, 64
  %v492 = vpop.permute.xlu0 %491
  %v494 = vmul.f32 %v477, %v492
  %496 = vrot.lane.b32.xlu0 %v494, 32
  %v497 = vpop.permute.xlu0 %496
  %s499 = scalar_lea.vmem [#allocation3], 16
  %500 = vst.msk [vmem:[%s499] sm:$0xff] %vm199, %v497
  %s501 = scalar_lea.vmem [#allocation2], 24
  %v502 = vld [vmem:[%s501] sm:$0xff]
  %v503 = vsel %vm199, %v497, 0
  %505 = vmatprep.subr.mxu0 0.0
  %506 = vmatpush1.msra.mxu0 %v41
  %507 = vmatprep.subr.mxu0 0.0
  %508 = vmatpush1.msra.mxu0 %v42
  %509 = vmatprep.subr.mxu0 0.0
  %510 = vmatpush1.msra.mxu0 %v43
  %511 = vmatprep.subr.mxu0 0.0
  %512 = vmatpush1.msra.mxu0 %v44
  %513 = vmatprep.subr.mxu0 0.0
  %514 = vmatpush1.msra.mxu0 0.0
  %515 = vmatprep.subr.mxu0 0.0
  %516 = vmatpush1.msra.mxu0 0.0
  %517 = vmatprep.subr.mxu0 0.0
  %518 = vmatpush1.msra.mxu0 0.0
  %519 = vmatprep.subr.mxu0 0.0
  %520 = vmatpush1.msra.mxu0 0.0
  %521 = vmatprep.subr.mxu0 0.0
  %522 = vmatpush1.msra.mxu0 0.0
  %523 = vmatprep.subr.mxu0 0.0
  %524 = vmatpush1.msra.mxu0 0.0
  %525 = vmatprep.subr.mxu0 0.0
  %526 = vmatpush1.msra.mxu0 0.0
  %527 = vmatprep.subr.mxu0 0.0
  %528 = vmatpush1.msra.mxu0 0.0
  %529 = vmatprep.subr.mxu0 0.0
  %530 = vmatpush1.msra.mxu0 0.0
  %531 = vmatprep.subr.mxu0 0.0
  %532 = vmatpush1.msra.mxu0 0.0
  %533 = vmatprep.subr.mxu0 0.0
  %534 = vmatpush1.msra.mxu0 0.0
  %535 = vmatprep.subr.mxu0 0.0
  %536 = vmatpush1.msra.mxu0 0.0
  %537 = vmatprep.subr.mxu0 0.0
  %538 = vmatpush1.msra.mxu0 0.0
  %539 = vmatprep.subr.mxu0 0.0
  %540 = vmatpush1.msra.mxu0 0.0
  %541 = vmatprep.subr.mxu0 0.0
  %542 = vmatpush1.msra.mxu0 0.0
  %543 = vmatprep.subr.mxu0 0.0
  %544 = vmatpush1.msra.mxu0 0.0
  %545 = vmatprep.subr.mxu0 0.0
  %546 = vmatpush1.msra.mxu0 0.0
  %547 = vmatprep.subr.mxu0 0.0
  %548 = vmatpush1.msra.mxu0 0.0
  %549 = vmatprep.subr.mxu0 0.0
  %550 = vmatpush1.msra.mxu0 0.0
  %551 = vmatprep.subr.mxu0 0.0
  %552 = vmatpush1.msra.mxu0 0.0
  %553 = vmatprep.subr.mxu0 0.0
  %554 = vmatpush1.msra.mxu0 0.0
  %555 = vmatprep.subr.mxu0 0.0
  %556 = vmatpush1.msra.mxu0 0.0
  %557 = vmatprep.subr.mxu0 0.0
  %558 = vmatpush1.msra.mxu0 0.0
  %559 = vmatprep.subr.mxu0 0.0
  %560 = vmatpush1.msra.mxu0 0.0
  %561 = vmatprep.subr.mxu0 0.0
  %562 = vmatpush1.msra.mxu0 0.0
  %563 = vmatprep.subr.mxu0 0.0
  %564 = vmatpush1.msra.mxu0 0.0
  %565 = vmatprep.subr.mxu0 0.0
  %566 = vmatpush1.msra.mxu0 0.0
  %567 = vmatprep.subr.mxu0 0.0
  %568 = vmatpush1.msra.mxu0 0.0
  %569 = vmatprep.mubr.f32.mxu0 0.0
  %570 = vmatmul.mubr.f32.gmra.mrb[0].mxu0 %v503
  %v571 = vpop.f32.mrb[0].mxu0
  %v572 = vadd.f32 %v502, %v571
  %v573 = vpop.f32.mrb[0].mxu0
  %574 = vdwg.mxu0
  %v575 = vmul.f32 %v572, %v37
  %v576 = vtanh.pop %v575
  %v577 = vmul.f32 %v576, %v37
  %v578 = vadd.f32 %v577, %v38
  %v579 = vmul.f32 %v578, %v488
  %581 = vrot.lane.b32.xlu0 %v578, 64
  %v582 = vpop.permute.xlu0 %581
  %v584 = vmul.f32 %v578, %v582
  %586 = vrot.lane.b32.xlu0 %v584, 32
  %v587 = vpop.permute.xlu0 %586
  %v589 = vadd.f32 %v579, %v587
  %v590 = vtanh.pop %v589
  %592 = vrot.lane.b32.xlu0 %v590, 64
  %v593 = vpop.permute.xlu0 %592
  %v595 = vmul.f32 %v578, %v593
  %597 = vrot.lane.b32.xlu0 %v595, 32
  %v598 = vpop.permute.xlu0 %597
  %s600 = scalar_lea.vmem [#allocation3], 24
  %601 = vst.msk [vmem:[%s600] sm:$0xff] %vm199, %v598
  %s602 = scalar_lea.vmem [#allocation2], 32
  %v603 = vld [vmem:[%s602] sm:$0xff]
  %v604 = vsel %vm199, %v598, 0
  %606 = vmatprep.subr.mxu0 0.0
  %607 = vmatpush1.msra.mxu0 %v41
  %608 = vmatprep.subr.mxu0 0.0
  %609 = vmatpush1.msra.mxu0 %v42
  %610 = vmatprep.subr.mxu0 0.0
  %611 = vmatpush1.msra.mxu0 %v43
  %612 = vmatprep.subr.mxu0 0.0
  %613 = vmatpush1.msra.mxu0 %v44
  %614 = vmatprep.subr.mxu0 0.0
  %615 = vmatpush1.msra.mxu0 0.0
  %616 = vmatprep.subr.mxu0 0.0
  %617 = vmatpush1.msra.mxu0 0.0
  %618 = vmatprep.subr.mxu0 0.0
  %619 = vmatpush1.msra.mxu0 0.0
  %620 = vmatprep.subr.mxu0 0.0
  %621 = vmatpush1.msra.mxu0 0.0
  %622 = vmatprep.subr.mxu0 0.0
  %623 = vmatpush1.msra.mxu0 0.0
  %624 = vmatprep.subr.mxu0 0.0
  %625 = vmatpush1.msra.mxu0 0.0
  %626 = vmatprep.subr.mxu0 0.0
  %627 = vmatpush1.msra.mxu0 0.0
  %628 = vmatprep.subr.mxu0 0.0
  %629 = vmatpush1.msra.mxu0 0.0
  %630 = vmatprep.subr.mxu0 0.0
  %631 = vmatpush1.msra.mxu0 0.0
  %632 = vmatprep.subr.mxu0 0.0
  %633 = vmatpush1.msra.mxu0 0.0
  %634 = vmatprep.subr.mxu0 0.0
  %635 = vmatpush1.msra.mxu0 0.0
  %636 = vmatprep.subr.mxu0 0.0
  %637 = vmatpush1.msra.mxu0 0.0
  %638 = vmatprep.subr.mxu0 0.0
  %639 = vmatpush1.msra.mxu0 0.0
  %640 = vmatprep.subr.mxu0 0.0
  %641 = vmatpush1.msra.mxu0 0.0
  %642 = vmatprep.subr.mxu0 0.0
  %643 = vmatpush1.msra.mxu0 0.0
  %644 = vmatprep.subr.mxu0 0.0
  %645 = vmatpush1.msra.mxu0 0.0
  %646 = vmatprep.subr.mxu0 0.0
  %647 = vmatpush1.msra.mxu0 0.0
  %648 = vmatprep.subr.mxu0 0.0
  %649 = vmatpush1.msra.mxu0 0.0
  %650 = vmatprep.subr.mxu0 0.0
  %651 = vmatpush1.msra.mxu0 0.0
  %652 = vmatprep.subr.mxu0 0.0
  %653 = vmatpush1.msra.mxu0 0.0
  %654 = vmatprep.subr.mxu0 0.0
  %655 = vmatpush1.msra.mxu0 0.0
  %656 = vmatprep.subr.mxu0 0.0
  %657 = vmatpush1.msra.mxu0 0.0
  %658 = vmatprep.subr.mxu0 0.0
  %659 = vmatpush1.msra.mxu0 0.0
  %660 = vmatprep.subr.mxu0 0.0
  %661 = vmatpush1.msra.mxu0 0.0
  %662 = vmatprep.subr.mxu0 0.0
  %663 = vmatpush1.msra.mxu0 0.0
  %664 = vmatprep.subr.mxu0 0.0
  %665 = vmatpush1.msra.mxu0 0.0
  %666 = vmatprep.subr.mxu0 0.0
  %667 = vmatpush1.msra.mxu0 0.0
  %668 = vmatprep.subr.mxu0 0.0
  %669 = vmatpush1.msra.mxu0 0.0
  %670 = vmatprep.mubr.f32.mxu0 0.0
  %671 = vmatmul.mubr.f32.gmra.mrb[0].mxu0 %v604
  %v672 = vpop.f32.mrb[0].mxu0
  %v673 = vadd.f32 %v603, %v672
  %v674 = vpop.f32.mrb[0].mxu0
  %675 = vdwg.mxu0
  %v676 = vmul.f32 %v673, %v37
  %v677 = vtanh.pop %v676
  %v678 = vmul.f32 %v677, %v37
  %v679 = vadd.f32 %v678, %v38
  %v680 = vmul.f32 %v679, %v589
  %682 = vrot.lane.b32.xlu0 %v679, 64
  %v683 = vpop.permute.xlu0 %682
  %v685 = vmul.f32 %v679, %v683
  %687 = vrot.lane.b32.xlu0 %v685, 32
  %v688 = vpop.permute.xlu0 %687
  %v690 = vadd.f32 %v680, %v688
  %v691 = vtanh.pop %v690
  %693 = vrot.lane.b32.xlu0 %v691, 64
  %v694 = vpop.permute.xlu0 %693
  %v696 = vmul.f32 %v679, %v694
  %698 = vrot.lane.b32.xlu0 %v696, 32
  %v699 = vpop.permute.xlu0 %698
  %s701 = scalar_lea.vmem [#allocation3], 32
  %702 = vst.msk [vmem:[%s701] sm:$0xff] %vm199, %v699
  %s703 = scalar_lea.vmem [#allocation2], 40
  %v704 = vld [vmem:[%s703] sm:$0xff]
  %v705 = vsel %vm199, %v699, 0
  %707 = vmatprep.subr.mxu0 0.0
  %708 = vmatpush1.msra.mxu0 %v41
  %709 = vmatprep.subr.mxu0 0.0
  %710 = vmatpush1.msra.mxu0 %v42
  %711 = vmatprep.subr.mxu0 0.0
  %712 = vmatpush1.msra.mxu0 %v43
  %713 = vmatprep.subr.mxu0 0.0
  %714 = vmatpush1.msra.mxu0 %v44
  %715 = vmatprep.subr.mxu0 0.0
  %716 = vmatpush1.msra.mxu0 0.0
  %717 = vmatprep.subr.mxu0 0.0
  %718 = vmatpush1.msra.mxu0 0.0
  %719 = vmatprep.subr.mxu0 0.0
  %720 = vmatpush1.msra.mxu0 0.0
  %721 = vmatprep.subr.mxu0 0.0
  %722 = vmatpush1.msra.mxu0 0.0
  %723 = vmatprep.subr.mxu0 0.0
  %724 = vmatpush1.msra.mxu0 0.0
  %725 = vmatprep.subr.mxu0 0.0
  %726 = vmatpush1.msra.mxu0 0.0
  %727 = vmatprep.subr.mxu0 0.0
  %728 = vmatpush1.msra.mxu0 0.0
  %729 = vmatprep.subr.mxu0 0.0
  %730 = vmatpush1.msra.mxu0 0.0
  %731 = vmatprep.subr.mxu0 0.0
  %732 = vmatpush1.msra.mxu0 0.0
  %733 = vmatprep.subr.mxu0 0.0
  %734 = vmatpush1.msra.mxu0 0.0
  %735 = vmatprep.subr.mxu0 0.0
  %736 = vmatpush1.msra.mxu0 0.0
  %737 = vmatprep.subr.mxu0 0.0
  %738 = vmatpush1.msra.mxu0 0.0
  %739 = vmatprep.subr.mxu0 0.0
  %740 = vmatpush1.msra.mxu0 0.0
  %741 = vmatprep.subr.mxu0 0.0
  %742 = vmatpush1.msra.mxu0 0.0
  %743 = vmatprep.subr.mxu0 0.0
  %744 = vmatpush1.msra.mxu0 0.0
  %745 = vmatprep.subr.mxu0 0.0
  %746 = vmatpush1.msra.mxu0 0.0
  %747 = vmatprep.subr.mxu0 0.0
  %748 = vmatpush1.msra.mxu0 0.0
  %749 = vmatprep.subr.mxu0 0.0
  %750 = vmatpush1.msra.mxu0 0.0
  %751 = vmatprep.subr.mxu0 0.0
  %752 = vmatpush1.msra.mxu0 0.0
  %753 = vmatprep.subr.mxu0 0.0
  %754 = vmatpush1.msra.mxu0 0.0
  %755 = vmatprep.subr.mxu0 0.0
  %756 = vmatpush1.msra.mxu0 0.0
  %757 = vmatprep.subr.mxu0 0.0
  %758 = vmatpush1.msra.mxu0 0.0
  %759 = vmatprep.subr.mxu0 0.0
  %760 = vmatpush1.msra.mxu0 0.0
  %761 = vmatprep.subr.mxu0 0.0
  %762 = vmatpush1.msra.mxu0 0.0
  %763 = vmatprep.subr.mxu0 0.0
  %764 = vmatpush1.msra.mxu0 0.0
  %765 = vmatprep.subr.mxu0 0.0
  %766 = vmatpush1.msra.mxu0 0.0
  %767 = vmatprep.subr.mxu0 0.0
  %768 = vmatpush1.msra.mxu0 0.0
  %769 = vmatprep.subr.mxu0 0.0
  %770 = vmatpush1.msra.mxu0 0.0
  %771 = vmatprep.mubr.f32.mxu0 0.0
  %772 = vmatmul.mubr.f32.gmra.mrb[0].mxu0 %v705
  %v773 = vpop.f32.mrb[0].mxu0
  %v774 = vadd.f32 %v704, %v773
  %v775 = vpop.f32.mrb[0].mxu0
  %776 = vdwg.mxu0
  %v777 = vmul.f32 %v774, %v37
  %v778 = vtanh.pop %v777
  %v779 = vmul.f32 %v778, %v37
  %v780 = vadd.f32 %v779, %v38
  %v781 = vmul.f32 %v780, %v690
  %783 = vrot.lane.b32.xlu0 %v780, 64
  %v784 = vpop.permute.xlu0 %783
  %v786 = vmul.f32 %v780, %v784
  %788 = vrot.lane.b32.xlu0 %v786, 32
  %v789 = vpop.permute.xlu0 %788
  %v791 = vadd.f32 %v781, %v789
  %v792 = vtanh.pop %v791
  %794 = vrot.lane.b32.xlu0 %v792, 64
  %v795 = vpop.permute.xlu0 %794
  %v797 = vmul.f32 %v780, %v795
  %799 = vrot.lane.b32.xlu0 %v797, 32
  %v800 = vpop.permute.xlu0 %799
  %s802 = scalar_lea.vmem [#allocation3], 40
  %803 = vst.msk [vmem:[%s802] sm:$0xff] %vm199, %v800
  %s804 = scalar_lea.vmem [#allocation2], 48
  %v805 = vld [vmem:[%s804] sm:$0xff]
  %v806 = vsel %vm199, %v800, 0
  %808 = vmatprep.subr.mxu0 0.0
  %809 = vmatpush1.msra.mxu0 %v41
  %810 = vmatprep.subr.mxu0 0.0
  %811 = vmatpush1.msra.mxu0 %v42
  %812 = vmatprep.subr.mxu0 0.0
  %813 = vmatpush1.msra.mxu0 %v43
  %814 = vmatprep.subr.mxu0 0.0
  %815 = vmatpush1.msra.mxu0 %v44
  %816 = vmatprep.subr.mxu0 0.0
  %817 = vmatpush1.msra.mxu0 0.0
  %818 = vmatprep.subr.mxu0 0.0
  %819 = vmatpush1.msra.mxu0 0.0
  %820 = vmatprep.subr.mxu0 0.0
  %821 = vmatpush1.msra.mxu0 0.0
  %822 = vmatprep.subr.mxu0 0.0
  %823 = vmatpush1.msra.mxu0 0.0
  %824 = vmatprep.subr.mxu0 0.0
  %825 = vmatpush1.msra.mxu0 0.0
  %826 = vmatprep.subr.mxu0 0.0
  %827 = vmatpush1.msra.mxu0 0.0
  %828 = vmatprep.subr.mxu0 0.0
  %829 = vmatpush1.msra.mxu0 0.0
  %830 = vmatprep.subr.mxu0 0.0
  %831 = vmatpush1.msra.mxu0 0.0
  %832 = vmatprep.subr.mxu0 0.0
  %833 = vmatpush1.msra.mxu0 0.0
  %834 = vmatprep.subr.mxu0 0.0
  %835 = vmatpush1.msra.mxu0 0.0
  %836 = vmatprep.subr.mxu0 0.0
  %837 = vmatpush1.msra.mxu0 0.0
  %838 = vmatprep.subr.mxu0 0.0
  %839 = vmatpush1.msra.mxu0 0.0
  %840 = vmatprep.subr.mxu0 0.0
  %841 = vmatpush1.msra.mxu0 0.0
  %842 = vmatprep.subr.mxu0 0.0
  %843 = vmatpush1.msra.mxu0 0.0
  %844 = vmatprep.subr.mxu0 0.0
  %845 = vmatpush1.msra.mxu0 0.0
  %846 = vmatprep.subr.mxu0 0.0
  %847 = vmatpush1.msra.mxu0 0.0
  %848 = vmatprep.subr.mxu0 0.0
  %849 = vmatpush1.msra.mxu0 0.0
  %850 = vmatprep.subr.mxu0 0.0
  %851 = vmatpush1.msra.mxu0 0.0
  %852 = vmatprep.subr.mxu0 0.0
  %853 = vmatpush1.msra.mxu0 0.0
  %854 = vmatprep.subr.mxu0 0.0
  %855 = vmatpush1.msra.mxu0 0.0
  %856 = vmatprep.subr.mxu0 0.0
  %857 = vmatpush1.msra.mxu0 0.0
  %858 = vmatprep.subr.mxu0 0.0
  %859 = vmatpush1.msra.mxu0 0.0
  %860 = vmatprep.subr.mxu0 0.0
  %861 = vmatpush1.msra.mxu0 0.0
  %862 = vmatprep.subr.mxu0 0.0
  %863 = vmatpush1.msra.mxu0 0.0
  %864 = vmatprep.subr.mxu0 0.0
  %865 = vmatpush1.msra.mxu0 0.0
  %866 = vmatprep.subr.mxu0 0.0
  %867 = vmatpush1.msra.mxu0 0.0
  %868 = vmatprep.subr.mxu0 0.0
  %869 = vmatpush1.msra.mxu0 0.0
  %870 = vmatprep.subr.mxu0 0.0
  %871 = vmatpush1.msra.mxu0 0.0
  %872 = vmatprep.mubr.f32.mxu0 0.0
  %873 = vmatmul.mubr.f32.gmra.mrb[0].mxu0 %v806
  %v874 = vpop.f32.mrb[0].mxu0
  %v875 = vadd.f32 %v805, %v874
  %v876 = vpop.f32.mrb[0].mxu0
  %877 = vdwg.mxu0
  %v878 = vmul.f32 %v875, %v37
  %v879 = vtanh.pop %v878
  %v880 = vmul.f32 %v879, %v37
  %v881 = vadd.f32 %v880, %v38
  %v882 = vmul.f32 %v881, %v791
  %884 = vrot.lane.b32.xlu0 %v881, 64
  %v885 = vpop.permute.xlu0 %884
  %v887 = vmul.f32 %v881, %v885
  %889 = vrot.lane.b32.xlu0 %v887, 32
  %v890 = vpop.permute.xlu0 %889
  %v892 = vadd.f32 %v882, %v890
  %v893 = vtanh.pop %v892
  %895 = vrot.lane.b32.xlu0 %v893, 64
  %v896 = vpop.permute.xlu0 %895
  %v898 = vmul.f32 %v881, %v896
  %900 = vrot.lane.b32.xlu0 %v898, 32
  %v901 = vpop.permute.xlu0 %900
  %s903 = scalar_lea.vmem [#allocation3], 48
  %904 = vst.msk [vmem:[%s903] sm:$0xff] %vm199, %v901
  %s905 = scalar_lea.vmem [#allocation2], 56
  %v906 = vld [vmem:[%s905] sm:$0xff]
  %v907 = vsel %vm199, %v901, 0
  %909 = vmatprep.subr.mxu0 0.0
  %910 = vmatpush1.msra.mxu0 %v41
  %911 = vmatprep.subr.mxu0 0.0
  %912 = vmatpush1.msra.mxu0 %v42
  %913 = vmatprep.subr.mxu0 0.0
  %914 = vmatpush1.msra.mxu0 %v43
  %915 = vmatprep.subr.mxu0 0.0
  %916 = vmatpush1.msra.mxu0 %v44
  %917 = vmatprep.subr.mxu0 0.0
  %918 = vmatpush1.msra.mxu0 0.0
  %919 = vmatprep.subr.mxu0 0.0
  %920 = vmatpush1.msra.mxu0 0.0
  %921 = vmatprep.subr.mxu0 0.0
  %922 = vmatpush1.msra.mxu0 0.0
  %923 = vmatprep.subr.mxu0 0.0
  %924 = vmatpush1.msra.mxu0 0.0
  %925 = vmatprep.subr.mxu0 0.0
  %926 = vmatpush1.msra.mxu0 0.0
  %927 = vmatprep.subr.mxu0 0.0
  %928 = vmatpush1.msra.mxu0 0.0
  %929 = vmatprep.subr.mxu0 0.0
  %930 = vmatpush1.msra.mxu0 0.0
  %931 = vmatprep.subr.mxu0 0.0
  %932 = vmatpush1.msra.mxu0 0.0
  %933 = vmatprep.subr.mxu0 0.0
  %934 = vmatpush1.msra.mxu0 0.0
  %935 = vmatprep.subr.mxu0 0.0
  %936 = vmatpush1.msra.mxu0 0.0
  %937 = vmatprep.subr.mxu0 0.0
  %938 = vmatpush1.msra.mxu0 0.0
  %939 = vmatprep.subr.mxu0 0.0
  %940 = vmatpush1.msra.mxu0 0.0
  %941 = vmatprep.subr.mxu0 0.0
  %942 = vmatpush1.msra.mxu0 0.0
  %943 = vmatprep.subr.mxu0 0.0
  %944 = vmatpush1.msra.mxu0 0.0
  %945 = vmatprep.subr.mxu0 0.0
  %946 = vmatpush1.msra.mxu0 0.0
  %947 = vmatprep.subr.mxu0 0.0
  %948 = vmatpush1.msra.mxu0 0.0
  %949 = vmatprep.subr.mxu0 0.0
  %950 = vmatpush1.msra.mxu0 0.0
  %951 = vmatprep.subr.mxu0 0.0
  %952 = vmatpush1.msra.mxu0 0.0
  %953 = vmatprep.subr.mxu0 0.0
  %954 = vmatpush1.msra.mxu0 0.0
  %955 = vmatprep.subr.mxu0 0.0
  %956 = vmatpush1.msra.mxu0 0.0
  %957 = vmatprep.subr.mxu0 0.0
  %958 = vmatpush1.msra.mxu0 0.0
  %959 = vmatprep.subr.mxu0 0.0
  %960 = vmatpush1.msra.mxu0 0.0
  %961 = vmatprep.subr.mxu0 0.0
  %962 = vmatpush1.msra.mxu0 0.0
  %963 = vmatprep.subr.mxu0 0.0
  %964 = vmatpush1.msra.mxu0 0.0
  %965 = vmatprep.subr.mxu0 0.0
  %966 = vmatpush1.msra.mxu0 0.0
  %967 = vmatprep.subr.mxu0 0.0
  %968 = vmatpush1.msra.mxu0 0.0
  %969 = vmatprep.subr.mxu0 0.0
  %970 = vmatpush1.msra.mxu0 0.0
  %971 = vmatprep.subr.mxu0 0.0
  %972 = vmatpush1.msra.mxu0 0.0
  %973 = vmatprep.mubr.f32.mxu0 0.0
  %974 = vmatmul.mubr.f32.gmra.mrb[0].mxu0 %v907
  %v975 = vpop.f32.mrb[0].mxu0
  %v976 = vadd.f32 %v906, %v975
  %v977 = vpop.f32.mrb[0].mxu0
  %978 = vdwg.mxu0
  %v979 = vmul.f32 %v976, %v37
  %v980 = vtanh.pop %v979
  %v981 = vmul.f32 %v980, %v37
  %v982 = vadd.f32 %v981, %v38
  %v983 = vmul.f32 %v982, %v892
  %985 = vrot.lane.b32.xlu0 %v982, 64
  %v986 = vpop.permute.xlu0 %985
  %v988 = vmul.f32 %v982, %v986
  %990 = vrot.lane.b32.xlu0 %v988, 32
  %v991 = vpop.permute.xlu0 %990
  %v993 = vadd.f32 %v983, %v991
  %v994 = vtanh.pop %v993
  %996 = vrot.lane.b32.xlu0 %v994, 64
  %v997 = vpop.permute.xlu0 %996
  %v999 = vmul.f32 %v982, %v997
  %1001 = vrot.lane.b32.xlu0 %v999, 32
  %v1002 = vpop.permute.xlu0 %1001
  %s1004 = scalar_lea.vmem [#allocation3], 56
  %1005 = vst.msk [vmem:[%s1004] sm:$0xff] %vm199, %v1002
  %v1006 = vld [vmem:[%s4] sm:$0xff]
  %v1007 = vld [vmem:[%s4 + $0x8] sm:$0xff]
  %v1008 = vld [vmem:[%s4 + $0x10] sm:$0xff]
  %v1009 = vld [vmem:[%s4 + $0x18] sm:$0xff]
  %v1010 = vld [vmem:[%s5] sm:$0xff]
  %v1011 = vld [vmem:[%s5 + $0x8] sm:$0xff]
  %v1012 = vld [vmem:[%s5 + $0x10] sm:$0xff]
  %v1013 = vld [vmem:[%s5 + $0x18] sm:$0xff]
  %v1014 = vld [vmem:[%s6] sm:$0x1]
  %v1015 = vld [vmem:[#allocation3] sm:$0xff]
  %v1016 = vld [vmem:[#allocation3 + $0x8] sm:$0xff]
  %v1017 = vld [vmem:[#allocation3 + $0x10] sm:$0xff]
  %v1018 = vld [vmem:[#allocation3 + $0x18] sm:$0xff]
  %v1019 = vld [vmem:[#allocation3 + $0x20] sm:$0xff]
  %v1020 = vld [vmem:[#allocation3 + $0x28] sm:$0xff]
  %v1021 = vld [vmem:[#allocation3 + $0x30] sm:$0xff]
  %v1022 = vld [vmem:[#allocation3 + $0x38] sm:$0xff]
  %v1024 = vlaneseq
  %v1025 = vshrl.u32 %v1024, 7
  %v1026 = vsub.s32 0, %v1025
  %v1027 = vrot.slane %v1014, %v1026
  %v1030 = vsel %vm199, %v1015, 0
  %v1033 = vsel %vm199, %v1016, 0
  %v1036 = vsel %vm199, %v1017, 0
  %v1039 = vsel %vm199, %v1018, 0
  %v1042 = vsel %vm199, %v1019, 0
  %v1045 = vsel %vm199, %v1020, 0
  %v1048 = vsel %vm199, %v1021, 0
  %v1051 = vsel %vm199, %v1022, 0
  %1053 = vmatprep.subr.mxu0 0.0
  %1054 = vmatpush1.msra.mxu0 %v1006
  %1055 = vmatprep.subr.mxu0 0.0
  %1056 = vmatpush1.msra.mxu0 %v1007
  %1057 = vmatprep.subr.mxu0 0.0
  %1058 = vmatpush1.msra.mxu0 %v1008
  %1059 = vmatprep.subr.mxu0 0.0
  %1060 = vmatpush1.msra.mxu0 %v1009
  %1061 = vmatprep.subr.mxu0 0.0
  %1062 = vmatpush1.msra.mxu0 0.0
  %1063 = vmatprep.subr.mxu0 0.0
  %1064 = vmatpush1.msra.mxu0 0.0
  %1065 = vmatprep.subr.mxu0 0.0
  %1066 = vmatpush1.msra.mxu0 0.0
  %1067 = vmatprep.subr.mxu0 0.0
  %1068 = vmatpush1.msra.mxu0 0.0
  %1069 = vmatprep.subr.mxu0 0.0
  %1070 = vmatpush1.msra.mxu0 0.0
  %1071 = vmatprep.subr.mxu0 0.0
  %1072 = vmatpush1.msra.mxu0 0.0
  %1073 = vmatprep.subr.mxu0 0.0
  %1074 = vmatpush1.msra.mxu0 0.0
  %1075 = vmatprep.subr.mxu0 0.0
  %1076 = vmatpush1.msra.mxu0 0.0
  %1077 = vmatprep.subr.mxu0 0.0
  %1078 = vmatpush1.msra.mxu0 0.0
  %1079 = vmatprep.subr.mxu0 0.0
  %1080 = vmatpush1.msra.mxu0 0.0
  %1081 = vmatprep.subr.mxu0 0.0
  %1082 = vmatpush1.msra.mxu0 0.0
  %1083 = vmatprep.subr.mxu0 0.0
  %1084 = vmatpush1.msra.mxu0 0.0
  %1085 = vmatprep.subr.mxu0 0.0
  %1086 = vmatpush1.msra.mxu0 0.0
  %1087 = vmatprep.subr.mxu0 0.0
  %1088 = vmatpush1.msra.mxu0 0.0
  %1089 = vmatprep.subr.mxu0 0.0
  %1090 = vmatpush1.msra.mxu0 0.0
  %1091 = vmatprep.subr.mxu0 0.0
  %1092 = vmatpush1.msra.mxu0 0.0
  %1093 = vmatprep.subr.mxu0 0.0
  %1094 = vmatpush1.msra.mxu0 0.0
  %1095 = vmatprep.subr.mxu0 0.0
  %1096 = vmatpush1.msra.mxu0 0.0
  %1097 = vmatprep.subr.mxu0 0.0
  %1098 = vmatpush1.msra.mxu0 0.0
  %1099 = vmatprep.subr.mxu0 0.0
  %1100 = vmatpush1.msra.mxu0 0.0
  %1101 = vmatprep.subr.mxu0 0.0
  %1102 = vmatpush1.msra.mxu0 0.0
  %1103 = vmatprep.subr.mxu0 0.0
  %1104 = vmatpush1.msra.mxu0 0.0
  %1105 = vmatprep.subr.mxu0 0.0
  %1106 = vmatpush1.msra.mxu0 0.0
  %1107 = vmatprep.subr.mxu0 0.0
  %1108 = vmatpush1.msra.mxu0 0.0
  %1109 = vmatprep.subr.mxu0 0.0
  %1110 = vmatpush1.msra.mxu0 0.0
  %1111 = vmatprep.subr.mxu0 0.0
  %1112 = vmatpush1.msra.mxu0 0.0
  %1113 = vmatprep.subr.mxu0 0.0
  %1114 = vmatpush1.msra.mxu0 0.0
  %1115 = vmatprep.subr.mxu0 0.0
  %1116 = vmatpush1.msra.mxu0 0.0
  %1117 = vmatprep.mubr.f32.mxu0 0.0
  %1118 = vmatmul.mubr.f32.gmra.mrb[0].mxu0 %v1030
  %v1119 = vpop.f32.mrb[0].mxu0
  %v1120 = vadd.f32 %v1027, %v1119
  %v1121 = vpop.f32.mrb[0].mxu0
  %1122 = vmatprep.mubr.f32.mxu0 0.0
  %1123 = vmatmul.mubr.f32.gmra.mrb[0].mxu0 %v1033
  %v1124 = vpop.f32.mrb[0].mxu0
  %v1125 = vadd.f32 %v1027, %v1124
  %v1126 = vpop.f32.mrb[0].mxu0
  %1127 = vmatprep.mubr.f32.mxu0 0.0
  %1128 = vmatmul.mubr.f32.gmra.mrb[0].mxu0 %v1036
  %v1129 = vpop.f32.mrb[0].mxu0
  %v1130 = vadd.f32 %v1027, %v1129
  %v1131 = vpop.f32.mrb[0].mxu0
  %1132 = vmatprep.mubr.f32.mxu0 0.0
  %1133 = vmatmul.mubr.f32.gmra.mrb[0].mxu0 %v1039
  %v1134 = vpop.f32.mrb[0].mxu0
  %v1135 = vadd.f32 %v1027, %v1134
  %v1136 = vpop.f32.mrb[0].mxu0
  %1137 = vmatprep.mubr.f32.mxu0 0.0
  %1138 = vmatmul.mubr.f32.gmra.mrb[0].mxu0 %v1042
  %v1139 = vpop.f32.mrb[0].mxu0
  %v1140 = vadd.f32 %v1027, %v1139
  %v1141 = vpop.f32.mrb[0].mxu0
  %1142 = vmatprep.mubr.f32.mxu0 0.0
  %1143 = vmatmul.mubr.f32.gmra.mrb[0].mxu0 %v1045
  %v1144 = vpop.f32.mrb[0].mxu0
  %v1145 = vadd.f32 %v1027, %v1144
  %v1146 = vpop.f32.mrb[0].mxu0
  %1147 = vmatprep.mubr.f32.mxu0 0.0
  %1148 = vmatmul.mubr.f32.gmra.mrb[0].mxu0 %v1048
  %v1149 = vpop.f32.mrb[0].mxu0
  %v1150 = vadd.f32 %v1027, %v1149
  %v1151 = vpop.f32.mrb[0].mxu0
  %1152 = vmatprep.mubr.f32.mxu0 0.0
  %1153 = vmatmul.mubr.f32.gmra.mrb[0].mxu0 %v1051
  %v1154 = vpop.f32.mrb[0].mxu0
  %v1155 = vadd.f32 %v1027, %v1154
  %v1156 = vpop.f32.mrb[0].mxu0
  %1157 = vdwg.mxu0
  %1158 = vst [vmem:[#allocation2] sm:$0xff] %v1120
  %1159 = vst [vmem:[#allocation2 + $0x8] sm:$0xff] %v1125
  %1160 = vst [vmem:[#allocation2 + $0x10] sm:$0xff] %v1130
  %1161 = vst [vmem:[#allocation2 + $0x18] sm:$0xff] %v1135
  %1162 = vst [vmem:[#allocation2 + $0x20] sm:$0xff] %v1140
  %1163 = vst [vmem:[#allocation2 + $0x28] sm:$0xff] %v1145
  %1164 = vst [vmem:[#allocation2 + $0x30] sm:$0xff] %v1150
  %1165 = vst [vmem:[#allocation2 + $0x38] sm:$0xff] %v1155
  %v1166 = vld [vmem:[#allocation2] sm:$0xff]
  %1167 = vmatprep.subr.mxu0 0.0
  %1168 = vmatpush1.msra.mxu0 %v1010
  %1169 = vmatprep.subr.mxu0 0.0
  %1170 = vmatpush1.msra.mxu0 %v1011
  %1171 = vmatprep.subr.mxu0 0.0
  %1172 = vmatpush1.msra.mxu0 %v1012
  %1173 = vmatprep.subr.mxu0 0.0
  %1174 = vmatpush1.msra.mxu0 %v1013
  %1175 = vmatprep.subr.mxu0 0.0
  %1176 = vmatpush1.msra.mxu0 0.0
  %1177 = vmatprep.subr.mxu0 0.0
  %1178 = vmatpush1.msra.mxu0 0.0
  %1179 = vmatprep.subr.mxu0 0.0
  %1180 = vmatpush1.msra.mxu0 0.0
  %1181 = vmatprep.subr.mxu0 0.0
  %1182 = vmatpush1.msra.mxu0 0.0
  %1183 = vmatprep.subr.mxu0 0.0
  %1184 = vmatpush1.msra.mxu0 0.0
  %1185 = vmatprep.subr.mxu0 0.0
  %1186 = vmatpush1.msra.mxu0 0.0
  %1187 = vmatprep.subr.mxu0 0.0
  %1188 = vmatpush1.msra.mxu0 0.0
  %1189 = vmatprep.subr.mxu0 0.0
  %1190 = vmatpush1.msra.mxu0 0.0
  %1191 = vmatprep.subr.mxu0 0.0
  %1192 = vmatpush1.msra.mxu0 0.0
  %1193 = vmatprep.subr.mxu0 0.0
  %1194 = vmatpush1.msra.mxu0 0.0
  %1195 = vmatprep.subr.mxu0 0.0
  %1196 = vmatpush1.msra.mxu0 0.0
  %1197 = vmatprep.subr.mxu0 0.0
  %1198 = vmatpush1.msra.mxu0 0.0
  %1199 = vmatprep.subr.mxu0 0.0
  %1200 = vmatpush1.msra.mxu0 0.0
  %1201 = vmatprep.subr.mxu0 0.0
  %1202 = vmatpush1.msra.mxu0 0.0
  %1203 = vmatprep.subr.mxu0 0.0
  %1204 = vmatpush1.msra.mxu0 0.0
  %1205 = vmatprep.subr.mxu0 0.0
  %1206 = vmatpush1.msra.mxu0 0.0
  %1207 = vmatprep.subr.mxu0 0.0
  %1208 = vmatpush1.msra.mxu0 0.0
  %1209 = vmatprep.subr.mxu0 0.0
  %1210 = vmatpush1.msra.mxu0 0.0
  %1211 = vmatprep.subr.mxu0 0.0
  %1212 = vmatpush1.msra.mxu0 0.0
  %1213 = vmatprep.subr.mxu0 0.0
  %1214 = vmatpush1.msra.mxu0 0.0
  %1215 = vmatprep.subr.mxu0 0.0
  %1216 = vmatpush1.msra.mxu0 0.0
  %1217 = vmatprep.subr.mxu0 0.0
  %1218 = vmatpush1.msra.mxu0 0.0
  %1219 = vmatprep.subr.mxu0 0.0
  %1220 = vmatpush1.msra.mxu0 0.0
  %1221 = vmatprep.subr.mxu0 0.0
  %1222 = vmatpush1.msra.mxu0 0.0
  %1223 = vmatprep.subr.mxu0 0.0
  %1224 = vmatpush1.msra.mxu0 0.0
  %1225 = vmatprep.subr.mxu0 0.0
  %1226 = vmatpush1.msra.mxu0 0.0
  %1227 = vmatprep.subr.mxu0 0.0
  %1228 = vmatpush1.msra.mxu0 0.0
  %1229 = vmatprep.subr.mxu0 0.0
  %1230 = vmatpush1.msra.mxu0 0.0
  %1231 = vmatprep.mubr.f32.mxu0 0.0
  %1232 = vmatmul.mubr.f32.gmra.mrb[0].mxu0 %v201
  %v1233 = vpop.f32.mrb[0].mxu0
  %v1234 = vadd.f32 %v1166, %v1233
  %v1235 = vpop.f32.mrb[0].mxu0
  %1236 = vdwg.mxu0
  %v1237 = vmul.f32 %v1234, %v37
  %v1238 = vtanh.pop %v1237
  %v1239 = vmul.f32 %v1238, %v37
  %v1240 = vadd.f32 %v1239, %v38
  %v1241 = vmul.f32 %v1240, 0.0
  %1243 = vrot.lane.b32.xlu0 %v1240, 64
  %v1244 = vpop.permute.xlu0 %1243
  %v1246 = vmul.f32 %v1240, %v1244
  %1248 = vrot.lane.b32.xlu0 %v1246, 32
  %v1249 = vpop.permute.xlu0 %1248
  %v1251 = vadd.f32 %v1241, %v1249
  %v1252 = vtanh.pop %v1251
  %1254 = vrot.lane.b32.xlu0 %v1252, 64
  %v1255 = vpop.permute.xlu0 %1254
  %v1257 = vmul.f32 %v1240, %v1255
  %v1258 = vld [vmem:[%s299] sm:$0xff]
  %1260 = vrot.lane.b32.xlu0 %v1257, 32
  %v1261 = vpop.permute.xlu0 %1260
  %v1262 = vsel %vm199, %v1261, 0
  %1264 = vmatprep.subr.mxu0 0.0
  %1265 = vmatpush1.msra.mxu0 %v1010
  %1266 = vmatprep.subr.mxu0 0.0
  %1267 = vmatpush1.msra.mxu0 %v1011
  %1268 = vmatprep.subr.mxu0 0.0
  %1269 = vmatpush1.msra.mxu0 %v1012
  %1270 = vmatprep.subr.mxu0 0.0
  %1271 = vmatpush1.msra.mxu0 %v1013
  %1272 = vmatprep.subr.mxu0 0.0
  %1273 = vmatpush1.msra.mxu0 0.0
  %1274 = vmatprep.subr.mxu0 0.0
  %1275 = vmatpush1.msra.mxu0 0.0
  %1276 = vmatprep.subr.mxu0 0.0
  %1277 = vmatpush1.msra.mxu0 0.0
  %1278 = vmatprep.subr.mxu0 0.0
  %1279 = vmatpush1.msra.mxu0 0.0
  %1280 = vmatprep.subr.mxu0 0.0
  %1281 = vmatpush1.msra.mxu0 0.0
  %1282 = vmatprep.subr.mxu0 0.0
  %1283 = vmatpush1.msra.mxu0 0.0
  %1284 = vmatprep.subr.mxu0 0.0
  %1285 = vmatpush1.msra.mxu0 0.0
  %1286 = vmatprep.subr.mxu0 0.0
  %1287 = vmatpush1.msra.mxu0 0.0
  %1288 = vmatprep.subr.mxu0 0.0
  %1289 = vmatpush1.msra.mxu0 0.0
  %1290 = vmatprep.subr.mxu0 0.0
  %1291 = vmatpush1.msra.mxu0 0.0
  %1292 = vmatprep.subr.mxu0 0.0
  %1293 = vmatpush1.msra.mxu0 0.0
  %1294 = vmatprep.subr.mxu0 0.0
  %1295 = vmatpush1.msra.mxu0 0.0
  %1296 = vmatprep.subr.mxu0 0.0
  %1297 = vmatpush1.msra.mxu0 0.0
  %1298 = vmatprep.subr.mxu0 0.0
  %1299 = vmatpush1.msra.mxu0 0.0
  %1300 = vmatprep.subr.mxu0 0.0
  %1301 = vmatpush1.msra.mxu0 0.0
  %1302 = vmatprep.subr.mxu0 0.0
  %1303 = vmatpush1.msra.mxu0 0.0
  %1304 = vmatprep.subr.mxu0 0.0
  %1305 = vmatpush1.msra.mxu0 0.0
  %1306 = vmatprep.subr.mxu0 0.0
  %1307 = vmatpush1.msra.mxu0 0.0
  %1308 = vmatprep.subr.mxu0 0.0
  %1309 = vmatpush1.msra.mxu0 0.0
  %1310 = vmatprep.subr.mxu0 0.0
  %1311 = vmatpush1.msra.mxu0 0.0
  %1312 = vmatprep.subr.mxu0 0.0
  %1313 = vmatpush1.msra.mxu0 0.0
  %1314 = vmatprep.subr.mxu0 0.0
  %1315 = vmatpush1.msra.mxu0 0.0
  %1316 = vmatprep.subr.mxu0 0.0
  %1317 = vmatpush1.msra.mxu0 0.0
  %1318 = vmatprep.subr.mxu0 0.0
  %1319 = vmatpush1.msra.mxu0 0.0
  %1320 = vmatprep.subr.mxu0 0.0
  %1321 = vmatpush1.msra.mxu0 0.0
  %1322 = vmatprep.subr.mxu0 0.0
  %1323 = vmatpush1.msra.mxu0 0.0
  %1324 = vmatprep.subr.mxu0 0.0
  %1325 = vmatpush1.msra.mxu0 0.0
  %1326 = vmatprep.subr.mxu0 0.0
  %1327 = vmatpush1.msra.mxu0 0.0
  %1328 = vmatprep.mubr.f32.mxu0 0.0
  %1329 = vmatmul.mubr.f32.gmra.mrb[0].mxu0 %v1262
  %v1330 = vpop.f32.mrb[0].mxu0
  %v1331 = vadd.f32 %v1258, %v1330
  %v1332 = vpop.f32.mrb[0].mxu0
  %1333 = vdwg.mxu0
  %v1334 = vmul.f32 %v1331, %v37
  %v1335 = vtanh.pop %v1334
  %v1336 = vmul.f32 %v1335, %v37
  %v1337 = vadd.f32 %v1336, %v38
  %v1338 = vmul.f32 %v1337, %v1251
  %1340 = vrot.lane.b32.xlu0 %v1337, 64
  %v1341 = vpop.permute.xlu0 %1340
  %v1343 = vmul.f32 %v1337, %v1341
  %1345 = vrot.lane.b32.xlu0 %v1343, 32
  %v1346 = vpop.permute.xlu0 %1345
  %v1348 = vadd.f32 %v1338, %v1346
  %v1349 = vtanh.pop %v1348
  %1351 = vrot.lane.b32.xlu0 %v1349, 64
  %v1352 = vpop.permute.xlu0 %1351
  %v1354 = vmul.f32 %v1337, %v1352
  %v1355 = vld [vmem:[%s400] sm:$0xff]
  %1357 = vrot.lane.b32.xlu0 %v1354, 32
  %v1358 = vpop.permute.xlu0 %1357
  %v1359 = vsel %vm199, %v1358, 0
  %1361 = vmatprep.subr.mxu0 0.0
  %1362 = vmatpush1.msra.mxu0 %v1010
  %1363 = vmatprep.subr.mxu0 0.0
  %1364 = vmatpush1.msra.mxu0 %v1011
  %1365 = vmatprep.subr.mxu0 0.0
  %1366 = vmatpush1.msra.mxu0 %v1012
  %1367 = vmatprep.subr.mxu0 0.0
  %1368 = vmatpush1.msra.mxu0 %v1013
  %1369 = vmatprep.subr.mxu0 0.0
  %1370 = vmatpush1.msra.mxu0 0.0
  %1371 = vmatprep.subr.mxu0 0.0
  %1372 = vmatpush1.msra.mxu0 0.0
  %1373 = vmatprep.subr.mxu0 0.0
  %1374 = vmatpush1.msra.mxu0 0.0
  %1375 = vmatprep.subr.mxu0 0.0
  %1376 = vmatpush1.msra.mxu0 0.0
  %1377 = vmatprep.subr.mxu0 0.0
  %1378 = vmatpush1.msra.mxu0 0.0
  %1379 = vmatprep.subr.mxu0 0.0
  %1380 = vmatpush1.msra.mxu0 0.0
  %1381 = vmatprep.subr.mxu0 0.0
  %1382 = vmatpush1.msra.mxu0 0.0
  %1383 = vmatprep.subr.mxu0 0.0
  %1384 = vmatpush1.msra.mxu0 0.0
  %1385 = vmatprep.subr.mxu0 0.0
  %1386 = vmatpush1.msra.mxu0 0.0
  %1387 = vmatprep.subr.mxu0 0.0
  %1388 = vmatpush1.msra.mxu0 0.0
  %1389 = vmatprep.subr.mxu0 0.0
  %1390 = vmatpush1.msra.mxu0 0.0
  %1391 = vmatprep.subr.mxu0 0.0
  %1392 = vmatpush1.msra.mxu0 0.0
  %1393 = vmatprep.subr.mxu0 0.0
  %1394 = vmatpush1.msra.mxu0 0.0
  %1395 = vmatprep.subr.mxu0 0.0
  %1396 = vmatpush1.msra.mxu0 0.0
  %1397 = vmatprep.subr.mxu0 0.0
  %1398 = vmatpush1.msra.mxu0 0.0
  %1399 = vmatprep.subr.mxu0 0.0
  %1400 = vmatpush1.msra.mxu0 0.0
  %1401 = vmatprep.subr.mxu0 0.0
  %1402 = vmatpush1.msra.mxu0 0.0
  %1403 = vmatprep.subr.mxu0 0.0
  %1404 = vmatpush1.msra.mxu0 0.0
  %1405 = vmatprep.subr.mxu0 0.0
  %1406 = vmatpush1.msra.mxu0 0.0
  %1407 = vmatprep.subr.mxu0 0.0
  %1408 = vmatpush1.msra.mxu0 0.0
  %1409 = vmatprep.subr.mxu0 0.0
  %1410 = vmatpush1.msra.mxu0 0.0
  %1411 = vmatprep.subr.mxu0 0.0
  %1412 = vmatpush1.msra.mxu0 0.0
  %1413 = vmatprep.subr.mxu0 0.0
  %1414 = vmatpush1.msra.mxu0 0.0
  %1415 = vmatprep.subr.mxu0 0.0
  %1416 = vmatpush1.msra.mxu0 0.0
  %1417 = vmatprep.subr.mxu0 0.0
  %1418 = vmatpush1.msra.mxu0 0.0
  %1419 = vmatprep.subr.mxu0 0.0
  %1420 = vmatpush1.msra.mxu0 0.0
  %1421 = vmatprep.subr.mxu0 0.0
  %1422 = vmatpush1.msra.mxu0 0.0
  %1423 = vmatprep.subr.mxu0 0.0
  %1424 = vmatpush1.msra.mxu0 0.0
  %1425 = vmatprep.mubr.f32.mxu0 0.0
  %1426 = vmatmul.mubr.f32.gmra.mrb[0].mxu0 %v1359
  %v1427 = vpop.f32.mrb[0].mxu0
  %v1428 = vadd.f32 %v1355, %v1427
  %v1429 = vpop.f32.mrb[0].mxu0
  %1430 = vdwg.mxu0
  %v1431 = vmul.f32 %v1428, %v37
  %v1432 = vtanh.pop %v1431
  %v1433 = vmul.f32 %v1432, %v37
  %v1434 = vadd.f32 %v1433, %v38
  %v1435 = vmul.f32 %v1434, %v1348
  %1437 = vrot.lane.b32.xlu0 %v1434, 64
  %v1438 = vpop.permute.xlu0 %1437
  %v1440 = vmul.f32 %v1434, %v1438
  %1442 = vrot.lane.b32.xlu0 %v1440, 32
  %v1443 = vpop.permute.xlu0 %1442
  %v1445 = vadd.f32 %v1435, %v1443
  %v1446 = vtanh.pop %v1445
  %1448 = vrot.lane.b32.xlu0 %v1446, 64
  %v1449 = vpop.permute.xlu0 %1448
  %v1451 = vmul.f32 %v1434, %v1449
  %v1452 = vld [vmem:[%s501] sm:$0xff]
  %1454 = vrot.lane.b32.xlu0 %v1451, 32
  %v1455 = vpop.permute.xlu0 %1454
  %v1456 = vsel %vm199, %v1455, 0
  %1458 = vmatprep.subr.mxu0 0.0
  %1459 = vmatpush1.msra.mxu0 %v1010
  %1460 = vmatprep.subr.mxu0 0.0
  %1461 = vmatpush1.msra.mxu0 %v1011
  %1462 = vmatprep.subr.mxu0 0.0
  %1463 = vmatpush1.msra.mxu0 %v1012
  %1464 = vmatprep.subr.mxu0 0.0
  %1465 = vmatpush1.msra.mxu0 %v1013
  %1466 = vmatprep.subr.mxu0 0.0
  %1467 = vmatpush1.msra.mxu0 0.0
  %1468 = vmatprep.subr.mxu0 0.0
  %1469 = vmatpush1.msra.mxu0 0.0
  %1470 = vmatprep.subr.mxu0 0.0
  %1471 = vmatpush1.msra.mxu0 0.0
  %1472 = vmatprep.subr.mxu0 0.0
  %1473 = vmatpush1.msra.mxu0 0.0
  %1474 = vmatprep.subr.mxu0 0.0
  %1475 = vmatpush1.msra.mxu0 0.0
  %1476 = vmatprep.subr.mxu0 0.0
  %1477 = vmatpush1.msra.mxu0 0.0
  %1478 = vmatprep.subr.mxu0 0.0
  %1479 = vmatpush1.msra.mxu0 0.0
  %1480 = vmatprep.subr.mxu0 0.0
  %1481 = vmatpush1.msra.mxu0 0.0
  %1482 = vmatprep.subr.mxu0 0.0
  %1483 = vmatpush1.msra.mxu0 0.0
  %1484 = vmatprep.subr.mxu0 0.0
  %1485 = vmatpush1.msra.mxu0 0.0
  %1486 = vmatprep.subr.mxu0 0.0
  %1487 = vmatpush1.msra.mxu0 0.0
  %1488 = vmatprep.subr.mxu0 0.0
  %1489 = vmatpush1.msra.mxu0 0.0
  %1490 = vmatprep.subr.mxu0 0.0
  %1491 = vmatpush1.msra.mxu0 0.0
  %1492 = vmatprep.subr.mxu0 0.0
  %1493 = vmatpush1.msra.mxu0 0.0
  %1494 = vmatprep.subr.mxu0 0.0
  %1495 = vmatpush1.msra.mxu0 0.0
  %1496 = vmatprep.subr.mxu0 0.0
  %1497 = vmatpush1.msra.mxu0 0.0
  %1498 = vmatprep.subr.mxu0 0.0
  %1499 = vmatpush1.msra.mxu0 0.0
  %1500 = vmatprep.subr.mxu0 0.0
  %1501 = vmatpush1.msra.mxu0 0.0
  %1502 = vmatprep.subr.mxu0 0.0
  %1503 = vmatpush1.msra.mxu0 0.0
  %1504 = vmatprep.subr.mxu0 0.0
  %1505 = vmatpush1.msra.mxu0 0.0
  %1506 = vmatprep.subr.mxu0 0.0
  %1507 = vmatpush1.msra.mxu0 0.0
  %1508 = vmatprep.subr.mxu0 0.0
  %1509 = vmatpush1.msra.mxu0 0.0
  %1510 = vmatprep.subr.mxu0 0.0
  %1511 = vmatpush1.msra.mxu0 0.0
  %1512 = vmatprep.subr.mxu0 0.0
  %1513 = vmatpush1.msra.mxu0 0.0
  %1514 = vmatprep.subr.mxu0 0.0
  %1515 = vmatpush1.msra.mxu0 0.0
  %1516 = vmatprep.subr.mxu0 0.0
  %1517 = vmatpush1.msra.mxu0 0.0
  %1518 = vmatprep.subr.mxu0 0.0
  %1519 = vmatpush1.msra.mxu0 0.0
  %1520 = vmatprep.subr.mxu0 0.0
  %1521 = vmatpush1.msra.mxu0 0.0
  %1522 = vmatprep.mubr.f32.mxu0 0.0
  %1523 = vmatmul.mubr.f32.gmra.mrb[0].mxu0 %v1456
  %v1524 = vpop.f32.mrb[0].mxu0
  %v1525 = vadd.f32 %v1452, %v1524
  %v1526 = vpop.f32.mrb[0].mxu0
  %1527 = vdwg.mxu0
  %v1528 = vmul.f32 %v1525, %v37
  %v1529 = vtanh.pop %v1528
  %v1530 = vmul.f32 %v1529, %v37
  %v1531 = vadd.f32 %v1530, %v38
  %v1532 = vmul.f32 %v1531, %v1445
  %1534 = vrot.lane.b32.xlu0 %v1531, 64
  %v1535 = vpop.permute.xlu0 %1534
  %v1537 = vmul.f32 %v1531, %v1535
  %1539 = vrot.lane.b32.xlu0 %v1537, 32
  %v1540 = vpop.permute.xlu0 %1539
  %v1542 = vadd.f32 %v1532, %v1540
  %v1543 = vtanh.pop %v1542
  %1545 = vrot.lane.b32.xlu0 %v1543, 64
  %v1546 = vpop.permute.xlu0 %1545
  %v1548 = vmul.f32 %v1531, %v1546
  %v1549 = vld [vmem:[%s602] sm:$0xff]
  %1551 = vrot.lane.b32.xlu0 %v1548, 32
  %v1552 = vpop.permute.xlu0 %1551
  %v1553 = vsel %vm199, %v1552, 0
  %1555 = vmatprep.subr.mxu0 0.0
  %1556 = vmatpush1.msra.mxu0 %v1010
  %1557 = vmatprep.subr.mxu0 0.0
  %1558 = vmatpush1.msra.mxu0 %v1011
  %1559 = vmatprep.subr.mxu0 0.0
  %1560 = vmatpush1.msra.mxu0 %v1012
  %1561 = vmatprep.subr.mxu0 0.0
  %1562 = vmatpush1.msra.mxu0 %v1013
  %1563 = vmatprep.subr.mxu0 0.0
  %1564 = vmatpush1.msra.mxu0 0.0
  %1565 = vmatprep.subr.mxu0 0.0
  %1566 = vmatpush1.msra.mxu0 0.0
  %1567 = vmatprep.subr.mxu0 0.0
  %1568 = vmatpush1.msra.mxu0 0.0
  %1569 = vmatprep.subr.mxu0 0.0
  %1570 = vmatpush1.msra.mxu0 0.0
  %1571 = vmatprep.subr.mxu0 0.0
  %1572 = vmatpush1.msra.mxu0 0.0
  %1573 = vmatprep.subr.mxu0 0.0
  %1574 = vmatpush1.msra.mxu0 0.0
  %1575 = vmatprep.subr.mxu0 0.0
  %1576 = vmatpush1.msra.mxu0 0.0
  %1577 = vmatprep.subr.mxu0 0.0
  %1578 = vmatpush1.msra.mxu0 0.0
  %1579 = vmatprep.subr.mxu0 0.0
  %1580 = vmatpush1.msra.mxu0 0.0
  %1581 = vmatprep.subr.mxu0 0.0
  %1582 = vmatpush1.msra.mxu0 0.0
  %1583 = vmatprep.subr.mxu0 0.0
  %1584 = vmatpush1.msra.mxu0 0.0
  %1585 = vmatprep.subr.mxu0 0.0
  %1586 = vmatpush1.msra.mxu0 0.0
  %1587 = vmatprep.subr.mxu0 0.0
  %1588 = vmatpush1.msra.mxu0 0.0
  %1589 = vmatprep.subr.mxu0 0.0
  %1590 = vmatpush1.msra.mxu0 0.0
  %1591 = vmatprep.subr.mxu0 0.0
  %1592 = vmatpush1.msra.mxu0 0.0
  %1593 = vmatprep.subr.mxu0 0.0
  %1594 = vmatpush1.msra.mxu0 0.0
  %1595 = vmatprep.subr.mxu0 0.0
  %1596 = vmatpush1.msra.mxu0 0.0
  %1597 = vmatprep.subr.mxu0 0.0
  %1598 = vmatpush1.msra.mxu0 0.0
  %1599 = vmatprep.subr.mxu0 0.0
  %1600 = vmatpush1.msra.mxu0 0.0
  %1601 = vmatprep.subr.mxu0 0.0
  %1602 = vmatpush1.msra.mxu0 0.0
  %1603 = vmatprep.subr.mxu0 0.0
  %1604 = vmatpush1.msra.mxu0 0.0
  %1605 = vmatprep.subr.mxu0 0.0
  %1606 = vmatpush1.msra.mxu0 0.0
  %1607 = vmatprep.subr.mxu0 0.0
  %1608 = vmatpush1.msra.mxu0 0.0
  %1609 = vmatprep.subr.mxu0 0.0
  %1610 = vmatpush1.msra.mxu0 0.0
  %1611 = vmatprep.subr.mxu0 0.0
  %1612 = vmatpush1.msra.mxu0 0.0
  %1613 = vmatprep.subr.mxu0 0.0
  %1614 = vmatpush1.msra.mxu0 0.0
  %1615 = vmatprep.subr.mxu0 0.0
  %1616 = vmatpush1.msra.mxu0 0.0
  %1617 = vmatprep.subr.mxu0 0.0
  %1618 = vmatpush1.msra.mxu0 0.0
  %1619 = vmatprep.mubr.f32.mxu0 0.0
  %1620 = vmatmul.mubr.f32.gmra.mrb[0].mxu0 %v1553
  %v1621 = vpop.f32.mrb[0].mxu0
  %v1622 = vadd.f32 %v1549, %v1621
  %v1623 = vpop.f32.mrb[0].mxu0
  %1624 = vdwg.mxu0
  %v1625 = vmul.f32 %v1622, %v37
  %v1626 = vtanh.pop %v1625
  %v1627 = vmul.f32 %v1626, %v37
  %v1628 = vadd.f32 %v1627, %v38
  %v1629 = vmul.f32 %v1628, %v1542
  %1631 = vrot.lane.b32.xlu0 %v1628, 64
  %v1632 = vpop.permute.xlu0 %1631
  %v1634 = vmul.f32 %v1628, %v1632
  %1636 = vrot.lane.b32.xlu0 %v1634, 32
  %v1637 = vpop.permute.xlu0 %1636
  %v1639 = vadd.f32 %v1629, %v1637
  %v1640 = vtanh.pop %v1639
  %1642 = vrot.lane.b32.xlu0 %v1640, 64
  %v1643 = vpop.permute.xlu0 %1642
  %v1645 = vmul.f32 %v1628, %v1643
  %v1646 = vld [vmem:[%s703] sm:$0xff]
  %1648 = vrot.lane.b32.xlu0 %v1645, 32
  %v1649 = vpop.permute.xlu0 %1648
  %v1650 = vsel %vm199, %v1649, 0
  %1652 = vmatprep.subr.mxu0 0.0
  %1653 = vmatpush1.msra.mxu0 %v1010
  %1654 = vmatprep.subr.mxu0 0.0
  %1655 = vmatpush1.msra.mxu0 %v1011
  %1656 = vmatprep.subr.mxu0 0.0
  %1657 = vmatpush1.msra.mxu0 %v1012
  %1658 = vmatprep.subr.mxu0 0.0
  %1659 = vmatpush1.msra.mxu0 %v1013
  %1660 = vmatprep.subr.mxu0 0.0
  %1661 = vmatpush1.msra.mxu0 0.0
  %1662 = vmatprep.subr.mxu0 0.0
  %1663 = vmatpush1.msra.mxu0 0.0
  %1664 = vmatprep.subr.mxu0 0.0
  %1665 = vmatpush1.msra.mxu0 0.0
  %1666 = vmatprep.subr.mxu0 0.0
  %1667 = vmatpush1.msra.mxu0 0.0
  %1668 = vmatprep.subr.mxu0 0.0
  %1669 = vmatpush1.msra.mxu0 0.0
  %1670 = vmatprep.subr.mxu0 0.0
  %1671 = vmatpush1.msra.mxu0 0.0
  %1672 = vmatprep.subr.mxu0 0.0
  %1673 = vmatpush1.msra.mxu0 0.0
  %1674 = vmatprep.subr.mxu0 0.0
  %1675 = vmatpush1.msra.mxu0 0.0
  %1676 = vmatprep.subr.mxu0 0.0
  %1677 = vmatpush1.msra.mxu0 0.0
  %1678 = vmatprep.subr.mxu0 0.0
  %1679 = vmatpush1.msra.mxu0 0.0
  %1680 = vmatprep.subr.mxu0 0.0
  %1681 = vmatpush1.msra.mxu0 0.0
  %1682 = vmatprep.subr.mxu0 0.0
  %1683 = vmatpush1.msra.mxu0 0.0
  %1684 = vmatprep.subr.mxu0 0.0
  %1685 = vmatpush1.msra.mxu0 0.0
  %1686 = vmatprep.subr.mxu0 0.0
  %1687 = vmatpush1.msra.mxu0 0.0
  %1688 = vmatprep.subr.mxu0 0.0
  %1689 = vmatpush1.msra.mxu0 0.0
  %1690 = vmatprep.subr.mxu0 0.0
  %1691 = vmatpush1.msra.mxu0 0.0
  %1692 = vmatprep.subr.mxu0 0.0
  %1693 = vmatpush1.msra.mxu0 0.0
  %1694 = vmatprep.subr.mxu0 0.0
  %1695 = vmatpush1.msra.mxu0 0.0
  %1696 = vmatprep.subr.mxu0 0.0
  %1697 = vmatpush1.msra.mxu0 0.0
  %1698 = vmatprep.subr.mxu0 0.0
  %1699 = vmatpush1.msra.mxu0 0.0
  %1700 = vmatprep.subr.mxu0 0.0
  %1701 = vmatpush1.msra.mxu0 0.0
  %1702 = vmatprep.subr.mxu0 0.0
  %1703 = vmatpush1.msra.mxu0 0.0
  %1704 = vmatprep.subr.mxu0 0.0
  %1705 = vmatpush1.msra.mxu0 0.0
  %1706 = vmatprep.subr.mxu0 0.0
  %1707 = vmatpush1.msra.mxu0 0.0
  %1708 = vmatprep.subr.mxu0 0.0
  %1709 = vmatpush1.msra.mxu0 0.0
  %1710 = vmatprep.subr.mxu0 0.0
  %1711 = vmatpush1.msra.mxu0 0.0
  %1712 = vmatprep.subr.mxu0 0.0
  %1713 = vmatpush1.msra.mxu0 0.0
  %1714 = vmatprep.subr.mxu0 0.0
  %1715 = vmatpush1.msra.mxu0 0.0
  %1716 = vmatprep.mubr.f32.mxu0 0.0
  %1717 = vmatmul.mubr.f32.gmra.mrb[0].mxu0 %v1650
  %v1718 = vpop.f32.mrb[0].mxu0
  %v1719 = vadd.f32 %v1646, %v1718
  %v1720 = vpop.f32.mrb[0].mxu0
  %1721 = vdwg.mxu0
  %v1722 = vmul.f32 %v1719, %v37
  %v1723 = vtanh.pop %v1722
  %v1724 = vmul.f32 %v1723, %v37
  %v1725 = vadd.f32 %v1724, %v38
  %v1726 = vmul.f32 %v1725, %v1639
  %1728 = vrot.lane.b32.xlu0 %v1725, 64
  %v1729 = vpop.permute.xlu0 %1728
  %v1731 = vmul.f32 %v1725, %v1729
  %1733 = vrot.lane.b32.xlu0 %v1731, 32
  %v1734 = vpop.permute.xlu0 %1733
  %v1736 = vadd.f32 %v1726, %v1734
  %v1737 = vtanh.pop %v1736
  %1739 = vrot.lane.b32.xlu0 %v1737, 64
  %v1740 = vpop.permute.xlu0 %1739
  %v1742 = vmul.f32 %v1725, %v1740
  %v1743 = vld [vmem:[%s804] sm:$0xff]
  %1745 = vrot.lane.b32.xlu0 %v1742, 32
  %v1746 = vpop.permute.xlu0 %1745
  %v1747 = vsel %vm199, %v1746, 0
  %1749 = vmatprep.subr.mxu0 0.0
  %1750 = vmatpush1.msra.mxu0 %v1010
  %1751 = vmatprep.subr.mxu0 0.0
  %1752 = vmatpush1.msra.mxu0 %v1011
  %1753 = vmatprep.subr.mxu0 0.0
  %1754 = vmatpush1.msra.mxu0 %v1012
  %1755 = vmatprep.subr.mxu0 0.0
  %1756 = vmatpush1.msra.mxu0 %v1013
  %1757 = vmatprep.subr.mxu0 0.0
  %1758 = vmatpush1.msra.mxu0 0.0
  %1759 = vmatprep.subr.mxu0 0.0
  %1760 = vmatpush1.msra.mxu0 0.0
  %1761 = vmatprep.subr.mxu0 0.0
  %1762 = vmatpush1.msra.mxu0 0.0
  %1763 = vmatprep.subr.mxu0 0.0
  %1764 = vmatpush1.msra.mxu0 0.0
  %1765 = vmatprep.subr.mxu0 0.0
  %1766 = vmatpush1.msra.mxu0 0.0
  %1767 = vmatprep.subr.mxu0 0.0
  %1768 = vmatpush1.msra.mxu0 0.0
  %1769 = vmatprep.subr.mxu0 0.0
  %1770 = vmatpush1.msra.mxu0 0.0
  %1771 = vmatprep.subr.mxu0 0.0
  %1772 = vmatpush1.msra.mxu0 0.0
  %1773 = vmatprep.subr.mxu0 0.0
  %1774 = vmatpush1.msra.mxu0 0.0
  %1775 = vmatprep.subr.mxu0 0.0
  %1776 = vmatpush1.msra.mxu0 0.0
  %1777 = vmatprep.subr.mxu0 0.0
  %1778 = vmatpush1.msra.mxu0 0.0
  %1779 = vmatprep.subr.mxu0 0.0
  %1780 = vmatpush1.msra.mxu0 0.0
  %1781 = vmatprep.subr.mxu0 0.0
  %1782 = vmatpush1.msra.mxu0 0.0
  %1783 = vmatprep.subr.mxu0 0.0
  %1784 = vmatpush1.msra.mxu0 0.0
  %1785 = vmatprep.subr.mxu0 0.0
  %1786 = vmatpush1.msra.mxu0 0.0
  %1787 = vmatprep.subr.mxu0 0.0
  %1788 = vmatpush1.msra.mxu0 0.0
  %1789 = vmatprep.subr.mxu0 0.0
  %1790 = vmatpush1.msra.mxu0 0.0
  %1791 = vmatprep.subr.mxu0 0.0
  %1792 = vmatpush1.msra.mxu0 0.0
  %1793 = vmatprep.subr.mxu0 0.0
  %1794 = vmatpush1.msra.mxu0 0.0
  %1795 = vmatprep.subr.mxu0 0.0
  %1796 = vmatpush1.msra.mxu0 0.0
  %1797 = vmatprep.subr.mxu0 0.0
  %1798 = vmatpush1.msra.mxu0 0.0
  %1799 = vmatprep.subr.mxu0 0.0
  %1800 = vmatpush1.msra.mxu0 0.0
  %1801 = vmatprep.subr.mxu0 0.0
  %1802 = vmatpush1.msra.mxu0 0.0
  %1803 = vmatprep.subr.mxu0 0.0
  %1804 = vmatpush1.msra.mxu0 0.0
  %1805 = vmatprep.subr.mxu0 0.0
  %1806 = vmatpush1.msra.mxu0 0.0
  %1807 = vmatprep.subr.mxu0 0.0
  %1808 = vmatpush1.msra.mxu0 0.0
  %1809 = vmatprep.subr.mxu0 0.0
  %1810 = vmatpush1.msra.mxu0 0.0
  %1811 = vmatprep.subr.mxu0 0.0
  %1812 = vmatpush1.msra.mxu0 0.0
  %1813 = vmatprep.mubr.f32.mxu0 0.0
  %1814 = vmatmul.mubr.f32.gmra.mrb[0].mxu0 %v1747
  %v1815 = vpop.f32.mrb[0].mxu0
  %v1816 = vadd.f32 %v1743, %v1815
  %v1817 = vpop.f32.mrb[0].mxu0
  %1818 = vdwg.mxu0
  %v1819 = vmul.f32 %v1816, %v37
  %v1820 = vtanh.pop %v1819
  %v1821 = vmul.f32 %v1820, %v37
  %v1822 = vadd.f32 %v1821, %v38
  %v1823 = vmul.f32 %v1822, %v1736
  %1825 = vrot.lane.b32.xlu0 %v1822, 64
  %v1826 = vpop.permute.xlu0 %1825
  %v1828 = vmul.f32 %v1822, %v1826
  %1830 = vrot.lane.b32.xlu0 %v1828, 32
  %v1831 = vpop.permute.xlu0 %1830
  %v1833 = vadd.f32 %v1823, %v1831
  %v1834 = vtanh.pop %v1833
  %1836 = vrot.lane.b32.xlu0 %v1834, 64
  %v1837 = vpop.permute.xlu0 %1836
  %v1839 = vmul.f32 %v1822, %v1837
  %v1840 = vld [vmem:[%s905] sm:$0xff]
  %1842 = vrot.lane.b32.xlu0 %v1839, 32
  %v1843 = vpop.permute.xlu0 %1842
  %v1844 = vsel %vm199, %v1843, 0
  %1846 = vmatprep.subr.mxu0 0.0
  %1847 = vmatpush1.msra.mxu0 %v1010
  %1848 = vmatprep.subr.mxu0 0.0
  %1849 = vmatpush1.msra.mxu0 %v1011
  %1850 = vmatprep.subr.mxu0 0.0
  %1851 = vmatpush1.msra.mxu0 %v1012
  %1852 = vmatprep.subr.mxu0 0.0
  %1853 = vmatpush1.msra.mxu0 %v1013
  %1854 = vmatprep.subr.mxu0 0.0
  %1855 = vmatpush1.msra.mxu0 0.0
  %1856 = vmatprep.subr.mxu0 0.0
  %1857 = vmatpush1.msra.mxu0 0.0
  %1858 = vmatprep.subr.mxu0 0.0
  %1859 = vmatpush1.msra.mxu0 0.0
  %1860 = vmatprep.subr.mxu0 0.0
  %1861 = vmatpush1.msra.mxu0 0.0
  %1862 = vmatprep.subr.mxu0 0.0
  %1863 = vmatpush1.msra.mxu0 0.0
  %1864 = vmatprep.subr.mxu0 0.0
  %1865 = vmatpush1.msra.mxu0 0.0
  %1866 = vmatprep.subr.mxu0 0.0
  %1867 = vmatpush1.msra.mxu0 0.0
  %1868 = vmatprep.subr.mxu0 0.0
  %1869 = vmatpush1.msra.mxu0 0.0
  %1870 = vmatprep.subr.mxu0 0.0
  %1871 = vmatpush1.msra.mxu0 0.0
  %1872 = vmatprep.subr.mxu0 0.0
  %1873 = vmatpush1.msra.mxu0 0.0
  %1874 = vmatprep.subr.mxu0 0.0
  %1875 = vmatpush1.msra.mxu0 0.0
  %1876 = vmatprep.subr.mxu0 0.0
  %1877 = vmatpush1.msra.mxu0 0.0
  %1878 = vmatprep.subr.mxu0 0.0
  %1879 = vmatpush1.msra.mxu0 0.0
  %1880 = vmatprep.subr.mxu0 0.0
  %1881 = vmatpush1.msra.mxu0 0.0
  %1882 = vmatprep.subr.mxu0 0.0
  %1883 = vmatpush1.msra.mxu0 0.0
  %1884 = vmatprep.subr.mxu0 0.0
  %1885 = vmatpush1.msra.mxu0 0.0
  %1886 = vmatprep.subr.mxu0 0.0
  %1887 = vmatpush1.msra.mxu0 0.0
  %1888 = vmatprep.subr.mxu0 0.0
  %1889 = vmatpush1.msra.mxu0 0.0
  %1890 = vmatprep.subr.mxu0 0.0
  %1891 = vmatpush1.msra.mxu0 0.0
  %1892 = vmatprep.subr.mxu0 0.0
  %1893 = vmatpush1.msra.mxu0 0.0
  %1894 = vmatprep.subr.mxu0 0.0
  %1895 = vmatpush1.msra.mxu0 0.0
  %1896 = vmatprep.subr.mxu0 0.0
  %1897 = vmatpush1.msra.mxu0 0.0
  %1898 = vmatprep.subr.mxu0 0.0
  %1899 = vmatpush1.msra.mxu0 0.0
  %1900 = vmatprep.subr.mxu0 0.0
  %1901 = vmatpush1.msra.mxu0 0.0
  %1902 = vmatprep.subr.mxu0 0.0
  %1903 = vmatpush1.msra.mxu0 0.0
  %1904 = vmatprep.subr.mxu0 0.0
  %1905 = vmatpush1.msra.mxu0 0.0
  %1906 = vmatprep.subr.mxu0 0.0
  %1907 = vmatpush1.msra.mxu0 0.0
  %1908 = vmatprep.subr.mxu0 0.0
  %1909 = vmatpush1.msra.mxu0 0.0
  %1910 = vmatprep.mubr.f32.mxu0 0.0
  %1911 = vmatmul.mubr.f32.gmra.mrb[0].mxu0 %v1844
  %v1912 = vpop.f32.mrb[0].mxu0
  %v1913 = vadd.f32 %v1840, %v1912
  %v1914 = vpop.f32.mrb[0].mxu0
  %1915 = vdwg.mxu0
  %v1916 = vmul.f32 %v1913, %v37
  %v1917 = vtanh.pop %v1916
  %v1918 = vmul.f32 %v1917, %v37
  %v1919 = vadd.f32 %v1918, %v38
  %v1920 = vmul.f32 %v1919, %v1833
  %1922 = vrot.lane.b32.xlu0 %v1919, 64
  %v1923 = vpop.permute.xlu0 %1922
  %v1925 = vmul.f32 %v1919, %v1923
  %1927 = vrot.lane.b32.xlu0 %v1925, 32
  %v1928 = vpop.permute.xlu0 %1927
  %v1930 = vadd.f32 %v1920, %v1928
  %v1931 = vtanh.pop %v1930
  %1933 = vrot.lane.b32.xlu0 %v1931, 64
  %v1934 = vpop.permute.xlu0 %1933
  %v1936 = vmul.f32 %v1919, %v1934
  %v1937 = vld [vmem:[%s7] sm:$0xff]
  %v1938 = vld [vmem:[%s7 + $0x8] sm:$0xff]
  %v1939 = vld [vmem:[%s7 + $0x10] sm:$0xff]
  %v1940 = vld [vmem:[%s7 + $0x18] sm:$0xff]
  %v1941 = vld [vmem:[%s8] sm:$0x1]
  %v1943 = vlaneseq
  %v1944 = vshrl.u32 %v1943, 7
  %v1945 = vsub.s32 0, %v1944
  %v1946 = vrot.slane %v1941, %v1945
  %1949 = vrot.lane.b32.xlu0 %v1936, 32
  %v1950 = vpop.permute.xlu0 %1949
  %v1951 = vsel %vm199, %v1950, 0
  %1953 = vmatprep.subr.mxu0 0.0
  %1954 = vmatpush1.msra.mxu0 %v1937
  %1955 = vmatprep.subr.mxu0 0.0
  %1956 = vmatpush1.msra.mxu0 %v1938
  %1957 = vmatprep.subr.mxu0 0.0
  %1958 = vmatpush1.msra.mxu0 %v1939
  %1959 = vmatprep.subr.mxu0 0.0
  %1960 = vmatpush1.msra.mxu0 %v1940
  %1961 = vmatprep.subr.mxu0 0.0
  %1962 = vmatpush1.msra.mxu0 0.0
  %1963 = vmatprep.subr.mxu0 0.0
  %1964 = vmatpush1.msra.mxu0 0.0
  %1965 = vmatprep.subr.mxu0 0.0
  %1966 = vmatpush1.msra.mxu0 0.0
  %1967 = vmatprep.subr.mxu0 0.0
  %1968 = vmatpush1.msra.mxu0 0.0
  %1969 = vmatprep.subr.mxu0 0.0
  %1970 = vmatpush1.msra.mxu0 0.0
  %1971 = vmatprep.subr.mxu0 0.0
  %1972 = vmatpush1.msra.mxu0 0.0
  %1973 = vmatprep.subr.mxu0 0.0
  %1974 = vmatpush1.msra.mxu0 0.0
  %1975 = vmatprep.subr.mxu0 0.0
  %1976 = vmatpush1.msra.mxu0 0.0
  %1977 = vmatprep.subr.mxu0 0.0
  %1978 = vmatpush1.msra.mxu0 0.0
  %1979 = vmatprep.subr.mxu0 0.0
  %1980 = vmatpush1.msra.mxu0 0.0
  %1981 = vmatprep.subr.mxu0 0.0
  %1982 = vmatpush1.msra.mxu0 0.0
  %1983 = vmatprep.subr.mxu0 0.0
  %1984 = vmatpush1.msra.mxu0 0.0
  %1985 = vmatprep.subr.mxu0 0.0
  %1986 = vmatpush1.msra.mxu0 0.0
  %1987 = vmatprep.subr.mxu0 0.0
  %1988 = vmatpush1.msra.mxu0 0.0
  %1989 = vmatprep.subr.mxu0 0.0
  %1990 = vmatpush1.msra.mxu0 0.0
  %1991 = vmatprep.subr.mxu0 0.0
  %1992 = vmatpush1.msra.mxu0 0.0
  %1993 = vmatprep.subr.mxu0 0.0
  %1994 = vmatpush1.msra.mxu0 0.0
  %1995 = vmatprep.subr.mxu0 0.0
  %1996 = vmatpush1.msra.mxu0 0.0
  %1997 = vmatprep.subr.mxu0 0.0
  %1998 = vmatpush1.msra.mxu0 0.0
  %1999 = vmatprep.subr.mxu0 0.0
  %2000 = vmatpush1.msra.mxu0 0.0
  %2001 = vmatprep.subr.mxu0 0.0
  %2002 = vmatpush1.msra.mxu0 0.0
  %2003 = vmatprep.subr.mxu0 0.0
  %2004 = vmatpush1.msra.mxu0 0.0
  %2005 = vmatprep.subr.mxu0 0.0
  %2006 = vmatpush1.msra.mxu0 0.0
  %2007 = vmatprep.subr.mxu0 0.0
  %2008 = vmatpush1.msra.mxu0 0.0
  %2009 = vmatprep.subr.mxu0 0.0
  %2010 = vmatpush1.msra.mxu0 0.0
  %2011 = vmatprep.subr.mxu0 0.0
  %2012 = vmatpush1.msra.mxu0 0.0
  %2013 = vmatprep.subr.mxu0 0.0
  %2014 = vmatpush1.msra.mxu0 0.0
  %2015 = vmatprep.subr.mxu0 0.0
  %2016 = vmatpush1.msra.mxu0 0.0
  %2017 = vmatprep.mubr.f32.mxu0 0.0
  %2018 = vmatmul.mubr.f32.gmra.mrb[0].mxu0 %v1951
  %v2019 = vpop.f32.mrb[0].mxu0
  %v2020 = vadd.f32 %v1946, %v2019
  %v2021 = vpop.f32.mrb[0].mxu0
  %2022 = vdwg.mxu0
  %2023 = vst [vmem:[%s9] sm:$0xff] %v2020
  // Predicated region
  $region38: #{lstm_model_forward.1} parent=0 // pred_check
    _
  $region39: #{lstm_model_forward.1} parent=0 // pred_check_branch
    %2025 = sbr.rel (0) target = $region41
  $region40: #{lstm_model_forward.1} parent=0 // pred_region
    _
  $region41: #{lstm_model_forward.1} parent=0 // pred_fallthru
    _
  // Predicated region
  $region42: #{lstm_model_forward.1} parent=0 // pred_check
    _
  $region43: #{lstm_model_forward.1} parent=0 // pred_check_branch
    %2027 = sbr.rel (0) target = $region45
  $region44: #{lstm_model_forward.1} parent=0 // pred_region
    _
  $region45: #{lstm_model_forward.1} parent=0 // pred_fallthru
    _

</llo_original>
